<compile_context>
chip_gen: v6e
topology: v6e:2x2x1
jax: 0.10.0
libtpu: 0.0.40
codegen_flags: <defaults>
</compile_context>

<pallas_src>
import functools

import jax
import jax.numpy as jnp
from jax.experimental import pallas as pl
from jax.experimental.pallas import tpu as pltpu


def _vae_kernel(
    x_ref, eps_ref,
    # fused encoder: layer1 (Dp, 2H), layer2 block-diag (2H, 2L)
    enc_w1_ref, enc_b1_ref, enc_w2_ref, enc_b2_ref,
    # decoder
    d1w_ref, d1b_ref, d2w_ref, d2b_ref, d3w_ref, d3b_ref, d4w_ref, d4b_ref,
    # outputs
    xrec_ref, mulv_ref,
    *, latent_size,
):
    L = latent_size

    def linear(h_f32, w_ref, b_ref):
        # bf16 operands on the MXU, f32 accumulation, f32 bias add.
        return jnp.dot(h_f32.astype(jnp.bfloat16), w_ref[...],
                       preferred_element_type=jnp.float32) + b_ref[...]

    x = x_ref[...]                                            # (TB, Dp) f32

    # ---- fused encoder -------------------------------------------------
    h = jnp.maximum(linear(x, enc_w1_ref, enc_b1_ref), 0.0)   # (TB, 2H)
    mulv = linear(h, enc_w2_ref, enc_b2_ref)                  # (TB, 2L) = [mu|logvar]
    mu = mulv[:, :L]
    logvar = mulv[:, L:]

    # ---- reparameterization (training mode) ----------------------------
    std = jnp.exp(0.5 * logvar)
    latent = mu + eps_ref[...] * std                          # (TB, L)

    # ---- decoder: L -> H -> 2H -> 4H -> Dp ------------------------------
    h = jnp.maximum(linear(latent, d1w_ref, d1b_ref), 0.0)
    h = jnp.maximum(linear(h, d2w_ref, d2b_ref), 0.0)
    h = jnp.maximum(linear(h, d3w_ref, d3b_ref), 0.0)
    logits = linear(h, d4w_ref, d4b_ref)

    xrec_ref[...] = jax.nn.sigmoid(logits)
    mulv_ref[...] = mulv


def _round_up(n, m):
    return ((n + m - 1) // m) * m


@functools.partial(jax.jit, static_argnames=("image_size", "hidden_size", "latent_size"))
def mnist_vae_forward(x, eps, params, *, image_size, hidden_size, latent_size):
    """x: [B, 1, 28, 28] NCHW f32, eps: [B, L]. Returns (x_recon, mu, logvar)."""
    B = x.shape[0]
    D = image_size * image_size                # 784, matches x.view(-1, 28*28)
    H, L = hidden_size, latent_size
    Dp = _round_up(D, 128)                     # 896 = 7 * 128 (lane-dense)

    f32, bf16 = jnp.float32, jnp.bfloat16

    # ---- input flatten + lane / batch padding ---------------------------
    x_flat = x.reshape(B, D).astype(f32)
    x_pad = jnp.pad(x_flat, ((0, 0), (0, Dp - D)))

    TB = min(512, _round_up(B, 8))             # batch tile (multiple of 8)
    B_pad = _round_up(B, TB)
    if B_pad != B:
        x_pad = jnp.pad(x_pad, ((0, B_pad - B), (0, 0)))
        eps_pad = jnp.pad(eps.astype(f32), ((0, B_pad - B), (0, 0)))
    else:
        eps_pad = eps.astype(f32)

    # ---- weight packing (encoder fusion + D padding + bf16 cast) --------
    # fused encoder layer 1: (Dp, 2H); zero-padded rows keep results exact.
    enc_w1 = jnp.concatenate([params["e1w1"], params["e2w1"]], axis=1).astype(f32)
    enc_w1 = jnp.pad(enc_w1, ((0, Dp - D), (0, 0))).astype(bf16)
    enc_b1 = jnp.concatenate([params["e1b1"], params["e2b1"]], axis=1).astype(f32)
    # fused encoder layer 2: block-diagonal (2H, 2L) -> one matmul for mu|logvar
    enc_w2 = jnp.zeros((2 * H, 2 * L), f32)
    enc_w2 = enc_w2.at[:H, :L].set(params["e1w2"]).at[H:, L:].set(params["e2w2"])
    enc_w2 = enc_w2.astype(bf16)
    enc_b2 = jnp.concatenate([params["e1b2"], params["e2b2"]], axis=1).astype(f32)

    d1w = params["d1w"].astype(bf16); d1b = params["d1b"].astype(f32)
    d2w = params["d2w"].astype(bf16); d2b = params["d2b"].astype(f32)
    d3w = params["d3w"].astype(bf16); d3b = params["d3b"].astype(f32)
    d4w = jnp.pad(params["d4w"].astype(f32), ((0, 0), (0, Dp - D))).astype(bf16)
    d4b = jnp.pad(params["d4b"].astype(f32), ((0, 0), (0, Dp - D)))

    weights = [enc_w1, enc_b1, enc_w2, enc_b2,
               d1w, d1b, d2w, d2b, d3w, d3b, d4w, d4b]

    # ---- specs -----------------------------------------------------------
    def batch_spec(last):
        return pl.BlockSpec((TB, last), lambda i: (i, 0))

    def resident_spec(shape):
        nd = len(shape)
        return pl.BlockSpec(shape, lambda i, _nd=nd: (0,) * _nd)

    in_specs = ([batch_spec(Dp), batch_spec(L)]
                + [resident_spec(w.shape) for w in weights])
    out_shapes = (jax.ShapeDtypeStruct((B_pad, Dp), f32),
                  jax.ShapeDtypeStruct((B_pad, 2 * L), f32))
    out_specs = (batch_spec(Dp), batch_spec(2 * L))

    # ---- cost estimate (advisory) ---------------------------------------
    flops = 2 * B_pad * (Dp * 2 * H + 2 * H * 2 * L
                         + L * H + H * 2 * H + 2 * H * 4 * H + 4 * H * Dp)
    transcendentals = B_pad * (L + Dp)             # exp(std) + sigmoid
    bytes_accessed = ((x_pad.size + eps_pad.size) * 4
                      + sum(w.size * w.dtype.itemsize for w in weights)
                      + (B_pad * Dp + B_pad * 2 * L) * 4)

    kernel = functools.partial(_vae_kernel, latent_size=L)

    xrec_pad, mulv_pad = pl.pallas_call(
        kernel,
        out_shape=out_shapes,
        grid_spec=pltpu.PrefetchScalarGridSpec(
            num_scalar_prefetch=0,
            grid=(B_pad // TB,),
            in_specs=in_specs,
            out_specs=out_specs,
        ),
        compiler_params=pltpu.CompilerParams(
            dimension_semantics=("parallel",),
        ),
        cost_estimate=pl.CostEstimate(
            flops=flops,
            transcendentals=transcendentals,
            bytes_accessed=bytes_accessed,
        ),
    )(x_pad, eps_pad, *weights)

    x_recon = xrec_pad[:B, :D]
    mu = mulv_pad[:B, :L]
    logvar = mulv_pad[:B, L:]
    return x_recon, mu, logvar


def init_params(key, image_size, hidden_size, latent_size):
    """Deterministic synthetic params. Weights stored (in, out); biases (1, out)."""
    D = image_size * image_size
    H, L = hidden_size, latent_size
    shapes = {
        "e1w1": (D, H), "e1b1": (1, H), "e1w2": (H, L), "e1b2": (1, L),
        "e2w1": (D, H), "e2b1": (1, H), "e2w2": (H, L), "e2b2": (1, L),
        "d1w": (L, H), "d1b": (1, H),
        "d2w": (H, 2 * H), "d2b": (1, 2 * H),
        "d3w": (2 * H, 4 * H), "d3b": (1, 4 * H),
        "d4w": (4 * H, D), "d4b": (1, D),
    }
    params = {}
    keys = jax.random.split(key, len(shapes))
    for k, (name, shp) in zip(keys, sorted(shapes.items())):
        fan_in = shp[0] if shp[0] > 1 else shp[1]
        params[name] = (jax.random.normal(k, shp, jnp.float32)
                        / jnp.sqrt(jnp.float32(fan_in)))
    return params


if __name__ == "__main__":
    IMAGE_SIZE = 28      # forward hard-codes view(-1, 28*28)
    HIDDEN_SIZE = 32
    LATENT_SIZE = 16
    BATCH = 2

    root = jax.random.PRNGKey(0)
    k_x, k_eps, k_p = jax.random.split(root, 3)

    x = jax.random.normal(k_x, (BATCH, 1, IMAGE_SIZE, IMAGE_SIZE), jnp.float32)
    eps = jax.random.normal(k_eps, (BATCH, LATENT_SIZE), jnp.float32)
    params = init_params(k_p, IMAGE_SIZE, HIDDEN_SIZE, LATENT_SIZE)

    x_recon, mu, logvar = mnist_vae_forward(
        x, eps, params,
        image_size=IMAGE_SIZE, hidden_size=HIDDEN_SIZE, latent_size=LATENT_SIZE,
    )
    jax.block_until_ready((x_recon, mu, logvar))

    # sanity checks on shapes / ranges
    assert x_recon.shape == (BATCH, IMAGE_SIZE * IMAGE_SIZE)
    assert mu.shape == (BATCH, LATENT_SIZE)
    assert logvar.shape == (BATCH, LATENT_SIZE)
    assert bool(jnp.all(x_recon >= 0.0)) and bool(jnp.all(x_recon <= 1.0))
    assert bool(jnp.all(jnp.isfinite(x_recon)))
    assert bool(jnp.all(jnp.isfinite(mu))) and bool(jnp.all(jnp.isfinite(logvar)))

    print("KERNEL_OK")
</pallas_src>

<mosaic_0001>
module attributes {stable_mosaic.version = 11 : i64} {
  func.func @_vae_kernel(%arg0: i32, %arg1: memref<8x896xf32, #tpu.memory_space<vmem>>, %arg2: memref<8x16xf32, #tpu.memory_space<vmem>>, %arg3: memref<896x64xbf16, #tpu.memory_space<vmem>>, %arg4: memref<1x64xf32, #tpu.memory_space<vmem>>, %arg5: memref<64x32xbf16, #tpu.memory_space<vmem>>, %arg6: memref<1x32xf32, #tpu.memory_space<vmem>>, %arg7: memref<16x32xbf16, #tpu.memory_space<vmem>>, %arg8: memref<1x32xf32, #tpu.memory_space<vmem>>, %arg9: memref<32x64xbf16, #tpu.memory_space<vmem>>, %arg10: memref<1x64xf32, #tpu.memory_space<vmem>>, %arg11: memref<64x128xbf16, #tpu.memory_space<vmem>>, %arg12: memref<1x128xf32, #tpu.memory_space<vmem>>, %arg13: memref<128x896xbf16, #tpu.memory_space<vmem>>, %arg14: memref<1x896xf32, #tpu.memory_space<vmem>>, %arg15: memref<8x896xf32, #tpu.memory_space<vmem>>, %arg16: memref<8x32xf32, #tpu.memory_space<vmem>>) attributes {dimension_semantics = [#tpu.dimension_semantics<parallel>], iteration_bounds = array<i64: 1>, scalar_prefetch = 0 : i64, scratch_operands = 0 : i64, tpu.core_type = #tpu.core_type<tc>, window_params = [{transform_indices = @transform_0, window_bounds = array<i64: 8, 896>}, {transform_indices = @transform_1, window_bounds = array<i64: 8, 16>}, {pipeline_mode = #tpu.pipeline_mode<synchronous>, transform_indices = @transform_2, window_bounds = array<i64: 896, 64>}, {pipeline_mode = #tpu.pipeline_mode<synchronous>, transform_indices = @transform_3, window_bounds = array<i64: 1, 64>}, {pipeline_mode = #tpu.pipeline_mode<synchronous>, transform_indices = @transform_4, window_bounds = array<i64: 64, 32>}, {pipeline_mode = #tpu.pipeline_mode<synchronous>, transform_indices = @transform_5, window_bounds = array<i64: 1, 32>}, {pipeline_mode = #tpu.pipeline_mode<synchronous>, transform_indices = @transform_6, window_bounds = array<i64: 16, 32>}, {pipeline_mode = #tpu.pipeline_mode<synchronous>, transform_indices = @transform_7, window_bounds = array<i64: 1, 32>}, {pipeline_mode = #tpu.pipeline_mode<synchronous>, transform_indices = @transform_8, window_bounds = array<i64: 32, 64>}, {pipeline_mode = #tpu.pipeline_mode<synchronous>, transform_indices = @transform_9, window_bounds = array<i64: 1, 64>}, {pipeline_mode = #tpu.pipeline_mode<synchronous>, transform_indices = @transform_10, window_bounds = array<i64: 64, 128>}, {pipeline_mode = #tpu.pipeline_mode<synchronous>, transform_indices = @transform_11, window_bounds = array<i64: 1, 128>}, {pipeline_mode = #tpu.pipeline_mode<synchronous>, transform_indices = @transform_12, window_bounds = array<i64: 128, 896>}, {pipeline_mode = #tpu.pipeline_mode<synchronous>, transform_indices = @transform_13, window_bounds = array<i64: 1, 896>}, {transform_indices = @transform_14, window_bounds = array<i64: 8, 896>}, {transform_indices = @transform_15, window_bounds = array<i64: 8, 32>}]} {
    %c0 = arith.constant 0 : index
    %c0_0 = arith.constant 0 : index
    %0 = vector.load %arg1[%c0, %c0_0] : memref<8x896xf32, #tpu.memory_space<vmem>>, vector<8x896xf32>
    %1 = arith.truncf %0 : vector<8x896xf32> to vector<8x896xbf16>
    %c0_1 = arith.constant 0 : index
    %c0_2 = arith.constant 0 : index
    %2 = vector.load %arg3[%c0_1, %c0_2] : memref<896x64xbf16, #tpu.memory_space<vmem>>, vector<896x64xbf16>
    %cst = arith.constant dense<0.000000e+00> : vector<8x64xf32>
    %3 = tpu.matmul %1, %2, %cst {dimension_numbers = #tpu.dot_dimension_numbers<[1], [0], [0], [1], [0, 0, 1, 1], [], []>} : vector<8x896xbf16>, vector<896x64xbf16>, vector<8x64xf32> -> vector<8x64xf32>
    %c0_3 = arith.constant 0 : index
    %c0_4 = arith.constant 0 : index
    %4 = vector.load %arg4[%c0_3, %c0_4] : memref<1x64xf32, #tpu.memory_space<vmem>>, vector<1x64xf32>
    %5 = vector.broadcast %4 : vector<1x64xf32> to vector<8x64xf32>
    %6 = arith.addf %3, %5 : vector<8x64xf32>
    %cst_5 = arith.constant 0.000000e+00 : f32
    %7 = vector.broadcast %cst_5 : f32 to vector<8x64xf32>
    %8 = arith.maximumf %6, %7 : vector<8x64xf32>
    %9 = arith.truncf %8 : vector<8x64xf32> to vector<8x64xbf16>
    %c0_6 = arith.constant 0 : index
    %c0_7 = arith.constant 0 : index
    %10 = vector.load %arg5[%c0_6, %c0_7] : memref<64x32xbf16, #tpu.memory_space<vmem>>, vector<64x32xbf16>
    %cst_8 = arith.constant dense<0.000000e+00> : vector<8x32xf32>
    %11 = tpu.matmul %9, %10, %cst_8 {dimension_numbers = #tpu.dot_dimension_numbers<[1], [0], [0], [1], [0, 0, 1, 1], [], []>} : vector<8x64xbf16>, vector<64x32xbf16>, vector<8x32xf32> -> vector<8x32xf32>
    %c0_9 = arith.constant 0 : index
    %c0_10 = arith.constant 0 : index
    %12 = vector.load %arg6[%c0_9, %c0_10] : memref<1x32xf32, #tpu.memory_space<vmem>>, vector<1x32xf32>
    %13 = vector.broadcast %12 : vector<1x32xf32> to vector<8x32xf32>
    %14 = arith.addf %11, %13 : vector<8x32xf32>
    %15 = vector.extract_strided_slice %14 {offsets = [0, 0], sizes = [8, 16], strides = [1, 1]} : vector<8x32xf32> to vector<8x16xf32>
    %16 = vector.extract_strided_slice %14 {offsets = [0, 16], sizes = [8, 16], strides = [1, 1]} : vector<8x32xf32> to vector<8x16xf32>
    %cst_11 = arith.constant 5.000000e-01 : f32
    %17 = vector.broadcast %cst_11 : f32 to vector<8x16xf32>
    %18 = arith.mulf %17, %16 : vector<8x16xf32>
    %19 = math.exp %18 : vector<8x16xf32>
    %c0_12 = arith.constant 0 : index
    %c0_13 = arith.constant 0 : index
    %20 = vector.load %arg2[%c0_12, %c0_13] : memref<8x16xf32, #tpu.memory_space<vmem>>, vector<8x16xf32>
    %21 = arith.mulf %20, %19 : vector<8x16xf32>
    %22 = arith.addf %15, %21 : vector<8x16xf32>
    %23 = arith.truncf %22 : vector<8x16xf32> to vector<8x16xbf16>
    %c0_14 = arith.constant 0 : index
    %c0_15 = arith.constant 0 : index
    %24 = vector.load %arg7[%c0_14, %c0_15] : memref<16x32xbf16, #tpu.memory_space<vmem>>, vector<16x32xbf16>
    %cst_16 = arith.constant dense<0.000000e+00> : vector<8x32xf32>
    %25 = tpu.matmul %23, %24, %cst_16 {dimension_numbers = #tpu.dot_dimension_numbers<[1], [0], [0], [1], [0, 0, 1, 1], [], []>} : vector<8x16xbf16>, vector<16x32xbf16>, vector<8x32xf32> -> vector<8x32xf32>
    %c0_17 = arith.constant 0 : index
    %c0_18 = arith.constant 0 : index
    %26 = vector.load %arg8[%c0_17, %c0_18] : memref<1x32xf32, #tpu.memory_space<vmem>>, vector<1x32xf32>
    %27 = vector.broadcast %26 : vector<1x32xf32> to vector<8x32xf32>
    %28 = arith.addf %25, %27 : vector<8x32xf32>
    %cst_19 = arith.constant 0.000000e+00 : f32
    %29 = vector.broadcast %cst_19 : f32 to vector<8x32xf32>
    %30 = arith.maximumf %28, %29 : vector<8x32xf32>
    %31 = arith.truncf %30 : vector<8x32xf32> to vector<8x32xbf16>
    %c0_20 = arith.constant 0 : index
    %c0_21 = arith.constant 0 : index
    %32 = vector.load %arg9[%c0_20, %c0_21] : memref<32x64xbf16, #tpu.memory_space<vmem>>, vector<32x64xbf16>
    %cst_22 = arith.constant dense<0.000000e+00> : vector<8x64xf32>
    %33 = tpu.matmul %31, %32, %cst_22 {dimension_numbers = #tpu.dot_dimension_numbers<[1], [0], [0], [1], [0, 0, 1, 1], [], []>} : vector<8x32xbf16>, vector<32x64xbf16>, vector<8x64xf32> -> vector<8x64xf32>
    %c0_23 = arith.constant 0 : index
    %c0_24 = arith.constant 0 : index
    %34 = vector.load %arg10[%c0_23, %c0_24] : memref<1x64xf32, #tpu.memory_space<vmem>>, vector<1x64xf32>
    %35 = vector.broadcast %34 : vector<1x64xf32> to vector<8x64xf32>
    %36 = arith.addf %33, %35 : vector<8x64xf32>
    %cst_25 = arith.constant 0.000000e+00 : f32
    %37 = vector.broadcast %cst_25 : f32 to vector<8x64xf32>
    %38 = arith.maximumf %36, %37 : vector<8x64xf32>
    %39 = arith.truncf %38 : vector<8x64xf32> to vector<8x64xbf16>
    %c0_26 = arith.constant 0 : index
    %c0_27 = arith.constant 0 : index
    %40 = vector.load %arg11[%c0_26, %c0_27] : memref<64x128xbf16, #tpu.memory_space<vmem>>, vector<64x128xbf16>
    %cst_28 = arith.constant dense<0.000000e+00> : vector<8x128xf32>
    %41 = tpu.matmul %39, %40, %cst_28 {dimension_numbers = #tpu.dot_dimension_numbers<[1], [0], [0], [1], [0, 0, 1, 1], [], []>} : vector<8x64xbf16>, vector<64x128xbf16>, vector<8x128xf32> -> vector<8x128xf32>
    %c0_29 = arith.constant 0 : index
    %c0_30 = arith.constant 0 : index
    %42 = vector.load %arg12[%c0_29, %c0_30] : memref<1x128xf32, #tpu.memory_space<vmem>>, vector<1x128xf32>
    %43 = vector.broadcast %42 : vector<1x128xf32> to vector<8x128xf32>
    %44 = arith.addf %41, %43 : vector<8x128xf32>
    %cst_31 = arith.constant 0.000000e+00 : f32
    %45 = vector.broadcast %cst_31 : f32 to vector<8x128xf32>
    %46 = arith.maximumf %44, %45 : vector<8x128xf32>
    %47 = arith.truncf %46 : vector<8x128xf32> to vector<8x128xbf16>
    %c0_32 = arith.constant 0 : index
    %c0_33 = arith.constant 0 : index
    %48 = vector.load %arg13[%c0_32, %c0_33] : memref<128x896xbf16, #tpu.memory_space<vmem>>, vector<128x896xbf16>
    %cst_34 = arith.constant dense<0.000000e+00> : vector<8x896xf32>
    %49 = tpu.matmul %47, %48, %cst_34 {dimension_numbers = #tpu.dot_dimension_numbers<[1], [0], [0], [1], [0, 0, 1, 1], [], []>} : vector<8x128xbf16>, vector<128x896xbf16>, vector<8x896xf32> -> vector<8x896xf32>
    %c0_35 = arith.constant 0 : index
    %c0_36 = arith.constant 0 : index
    %50 = vector.load %arg14[%c0_35, %c0_36] : memref<1x896xf32, #tpu.memory_space<vmem>>, vector<1x896xf32>
    %51 = vector.broadcast %50 : vector<1x896xf32> to vector<8x896xf32>
    %52 = arith.addf %49, %51 : vector<8x896xf32>
    %53 = arith.negf %52 : vector<8x896xf32>
    %54 = math.exp %53 : vector<8x896xf32>
    %cst_37 = arith.constant 1.000000e+00 : f32
    %55 = vector.broadcast %cst_37 : f32 to vector<8x896xf32>
    %56 = arith.addf %55, %54 : vector<8x896xf32>
    %57 = arith.divf %55, %56 : vector<8x896xf32>
    %c0_38 = arith.constant 0 : index
    %c0_39 = arith.constant 0 : index
    %58 = vector.load %arg15[%c0_38, %c0_39] : memref<8x896xf32, #tpu.memory_space<vmem>>, vector<8x896xf32>
    tpu.vector_store %arg15[%c0_38, %c0_39], %57 {strides = array<i32>} : memref<8x896xf32, #tpu.memory_space<vmem>>, vector<8x896xf32>,
    %c0_40 = arith.constant 0 : index
    %c0_41 = arith.constant 0 : index
    %59 = vector.load %arg16[%c0_40, %c0_41] : memref<8x32xf32, #tpu.memory_space<vmem>>, vector<8x32xf32>
    tpu.vector_store %arg16[%c0_40, %c0_41], %14 {strides = array<i32>} : memref<8x32xf32, #tpu.memory_space<vmem>>, vector<8x32xf32>,
    return
  }
  func.func @transform_0(%arg0: i32) -> (i32, i32) {
    %c0_i32 = arith.constant 0 : i32
    %c0_i32_0 = arith.constant 0 : i32
    return %arg0, %c0_i32 : i32, i32
  }
  func.func @transform_1(%arg0: i32) -> (i32, i32) {
    %c0_i32 = arith.constant 0 : i32
    %c0_i32_0 = arith.constant 0 : i32
    return %arg0, %c0_i32 : i32, i32
  }
  func.func @transform_2(%arg0: i32) -> (i32, i32) {
    %c0_i32 = arith.constant 0 : i32
    %c0_i32_0 = arith.constant 0 : i32
    %c0_i32_1 = arith.constant 0 : i32
    return %c0_i32, %c0_i32_0 : i32, i32
  }
  func.func @transform_3(%arg0: i32) -> (i32, i32) {
    %c0_i32 = arith.constant 0 : i32
    %c0_i32_0 = arith.constant 0 : i32
    %c0_i32_1 = arith.constant 0 : i32
    return %c0_i32, %c0_i32_0 : i32, i32
  }
  func.func @transform_4(%arg0: i32) -> (i32, i32) {
    %c0_i32 = arith.constant 0 : i32
    %c0_i32_0 = arith.constant 0 : i32
    %c0_i32_1 = arith.constant 0 : i32
    return %c0_i32, %c0_i32_0 : i32, i32
  }
  func.func @transform_5(%arg0: i32) -> (i32, i32) {
    %c0_i32 = arith.constant 0 : i32
    %c0_i32_0 = arith.constant 0 : i32
    %c0_i32_1 = arith.constant 0 : i32
    return %c0_i32, %c0_i32_0 : i32, i32
  }
  func.func @transform_6(%arg0: i32) -> (i32, i32) {
    %c0_i32 = arith.constant 0 : i32
    %c0_i32_0 = arith.constant 0 : i32
    %c0_i32_1 = arith.constant 0 : i32
    return %c0_i32, %c0_i32_0 : i32, i32
  }
  func.func @transform_7(%arg0: i32) -> (i32, i32) {
    %c0_i32 = arith.constant 0 : i32
    %c0_i32_0 = arith.constant 0 : i32
    %c0_i32_1 = arith.constant 0 : i32
    return %c0_i32, %c0_i32_0 : i32, i32
  }
  func.func @transform_8(%arg0: i32) -> (i32, i32) {
    %c0_i32 = arith.constant 0 : i32
    %c0_i32_0 = arith.constant 0 : i32
    %c0_i32_1 = arith.constant 0 : i32
    return %c0_i32, %c0_i32_0 : i32, i32
  }
  func.func @transform_9(%arg0: i32) -> (i32, i32) {
    %c0_i32 = arith.constant 0 : i32
    %c0_i32_0 = arith.constant 0 : i32
    %c0_i32_1 = arith.constant 0 : i32
    return %c0_i32, %c0_i32_0 : i32, i32
  }
  func.func @transform_10(%arg0: i32) -> (i32, i32) {
    %c0_i32 = arith.constant 0 : i32
    %c0_i32_0 = arith.constant 0 : i32
    %c0_i32_1 = arith.constant 0 : i32
    return %c0_i32, %c0_i32_0 : i32, i32
  }
  func.func @transform_11(%arg0: i32) -> (i32, i32) {
    %c0_i32 = arith.constant 0 : i32
    %c0_i32_0 = arith.constant 0 : i32
    %c0_i32_1 = arith.constant 0 : i32
    return %c0_i32, %c0_i32_0 : i32, i32
  }
  func.func @transform_12(%arg0: i32) -> (i32, i32) {
    %c0_i32 = arith.constant 0 : i32
    %c0_i32_0 = arith.constant 0 : i32
    %c0_i32_1 = arith.constant 0 : i32
    return %c0_i32, %c0_i32_0 : i32, i32
  }
  func.func @transform_13(%arg0: i32) -> (i32, i32) {
    %c0_i32 = arith.constant 0 : i32
    %c0_i32_0 = arith.constant 0 : i32
    %c0_i32_1 = arith.constant 0 : i32
    return %c0_i32, %c0_i32_0 : i32, i32
  }
  func.func @transform_14(%arg0: i32) -> (i32, i32) {
    %c0_i32 = arith.constant 0 : i32
    %c0_i32_0 = arith.constant 0 : i32
    return %arg0, %c0_i32 : i32, i32
  }
  func.func @transform_15(%arg0: i32) -> (i32, i32) {
    %c0_i32 = arith.constant 0 : i32
    %c0_i32_0 = arith.constant 0 : i32
    return %arg0, %c0_i32 : i32, i32
  }
}

</mosaic_0001>

<llo_original>
// kernel: mnist_vae_forward.1
$region0: #{mnist_vae_forward.1}
  #allocation0 [shape = 'u32[]', space=smem, size = 0x4, offset = 0x4, fixed_abs, tag = 'smem constant byte address 0x4 - core index']
  #allocation1 [shape = 'u32[144,128]{1,0:T(1,128)}', space=vmem, size = 0x12000, scoped, tag = 'internal scratch']
  %s0 = inlined_call_operand.vmem [shape: f32[8,896], index: 0, kind: input, shape index: {}]
  %s1 = inlined_call_operand.vmem [shape: f32[8,16], index: 1, kind: input, shape index: {}]
  %s2 = inlined_call_operand.vmem [shape: bf16[896,64], index: 2, kind: input, shape index: {}]
  %s3 = inlined_call_operand.vmem [shape: f32[1,64], index: 3, kind: input, shape index: {}]
  %s4 = inlined_call_operand.vmem [shape: bf16[64,32], index: 4, kind: input, shape index: {}]
  %s5 = inlined_call_operand.vmem [shape: f32[1,32], index: 5, kind: input, shape index: {}]
  %s6 = inlined_call_operand.vmem [shape: bf16[16,32], index: 6, kind: input, shape index: {}]
  %s7 = inlined_call_operand.vmem [shape: f32[1,32], index: 7, kind: input, shape index: {}]
  %s8 = inlined_call_operand.vmem [shape: bf16[32,64], index: 8, kind: input, shape index: {}]
  %s9 = inlined_call_operand.vmem [shape: f32[1,64], index: 9, kind: input, shape index: {}]
  %s10 = inlined_call_operand.vmem [shape: bf16[64,128], index: 10, kind: input, shape index: {}]
  %s11 = inlined_call_operand.vmem [shape: f32[1,128], index: 11, kind: input, shape index: {}]
  %s12 = inlined_call_operand.vmem [shape: bf16[128,896], index: 12, kind: input, shape index: {}]
  %s13 = inlined_call_operand.vmem [shape: f32[1,896], index: 13, kind: input, shape index: {}]
  %s14 = inlined_call_operand.vmem [shape: f32[8,896], index: 14, kind: output, shape index: {0}]
  %s15 = inlined_call_operand.vmem [shape: f32[8,32], index: 15, kind: output, shape index: {1}]
  %16 = xla_tuple %s14, %s15
  %s17 = sld [smem:[#allocation0]]
  $region74: #{mnist_vae_forward.1} parent=0
    _
  %s19 = ssub.s32 1, %s17
  %s20 = scalar_select 0, %s19, %s17
  // Predicated region
  $region2: #{mnist_vae_forward.1} parent=0 // pred_check
    _
  $region3: #{mnist_vae_forward.1} parent=0 // pred_check_branch
    %22 = sbr.rel (0) target = $region5
  $region4: #{mnist_vae_forward.1} parent=0 // pred_region
    _
  $region5: #{mnist_vae_forward.1} parent=0 // pred_fallthru
    _
  // Predicated region
  $region6: #{mnist_vae_forward.1} parent=0 // pred_check
    _
  $region7: #{mnist_vae_forward.1} parent=0 // pred_check_branch
    %24 = sbr.rel (0) target = $region9
  $region8: #{mnist_vae_forward.1} parent=0 // pred_region
    _
  $region9: #{mnist_vae_forward.1} parent=0 // pred_fallthru
    _
  // Predicated region
  $region10: #{mnist_vae_forward.1} parent=0 // pred_check
    _
  $region11: #{mnist_vae_forward.1} parent=0 // pred_check_branch
    %26 = sbr.rel (0) target = $region13
  $region12: #{mnist_vae_forward.1} parent=0 // pred_region
    _
  $region13: #{mnist_vae_forward.1} parent=0 // pred_fallthru
    _
  // Predicated region
  $region14: #{mnist_vae_forward.1} parent=0 // pred_check
    _
  $region15: #{mnist_vae_forward.1} parent=0 // pred_check_branch
    %28 = sbr.rel (0) target = $region17
  $region16: #{mnist_vae_forward.1} parent=0 // pred_region
    _
  $region17: #{mnist_vae_forward.1} parent=0 // pred_fallthru
    _
  // Predicated region
  $region18: #{mnist_vae_forward.1} parent=0 // pred_check
    _
  $region19: #{mnist_vae_forward.1} parent=0 // pred_check_branch
    %30 = sbr.rel (0) target = $region21
  $region20: #{mnist_vae_forward.1} parent=0 // pred_region
    _
  $region21: #{mnist_vae_forward.1} parent=0 // pred_fallthru
    _
  // Predicated region
  $region22: #{mnist_vae_forward.1} parent=0 // pred_check
    _
  $region23: #{mnist_vae_forward.1} parent=0 // pred_check_branch
    %32 = sbr.rel (0) target = $region25
  $region24: #{mnist_vae_forward.1} parent=0 // pred_region
    _
  $region25: #{mnist_vae_forward.1} parent=0 // pred_fallthru
    _
  // Predicated region
  $region26: #{mnist_vae_forward.1} parent=0 // pred_check
    _
  $region27: #{mnist_vae_forward.1} parent=0 // pred_check_branch
    %34 = sbr.rel (0) target = $region29
  $region28: #{mnist_vae_forward.1} parent=0 // pred_region
    _
  $region29: #{mnist_vae_forward.1} parent=0 // pred_fallthru
    _
  // Predicated region
  $region30: #{mnist_vae_forward.1} parent=0 // pred_check
    _
  $region31: #{mnist_vae_forward.1} parent=0 // pred_check_branch
    %36 = sbr.rel (0) target = $region33
  $region32: #{mnist_vae_forward.1} parent=0 // pred_region
    _
  $region33: #{mnist_vae_forward.1} parent=0 // pred_fallthru
    _
  // Predicated region
  $region34: #{mnist_vae_forward.1} parent=0 // pred_check
    _
  $region35: #{mnist_vae_forward.1} parent=0 // pred_check_branch
    %38 = sbr.rel (0) target = $region37
  $region36: #{mnist_vae_forward.1} parent=0 // pred_region
    _
  $region37: #{mnist_vae_forward.1} parent=0 // pred_fallthru
    _
  // Predicated region
  $region38: #{mnist_vae_forward.1} parent=0 // pred_check
    _
  $region39: #{mnist_vae_forward.1} parent=0 // pred_check_branch
    %40 = sbr.rel (0) target = $region41
  $region40: #{mnist_vae_forward.1} parent=0 // pred_region
    _
  $region41: #{mnist_vae_forward.1} parent=0 // pred_fallthru
    _
  // Predicated region
  $region42: #{mnist_vae_forward.1} parent=0 // pred_check
    _
  $region43: #{mnist_vae_forward.1} parent=0 // pred_check_branch
    %42 = sbr.rel (0) target = $region45
  $region44: #{mnist_vae_forward.1} parent=0 // pred_region
    _
  $region45: #{mnist_vae_forward.1} parent=0 // pred_fallthru
    _
  // Predicated region
  $region46: #{mnist_vae_forward.1} parent=0 // pred_check
    _
  $region47: #{mnist_vae_forward.1} parent=0 // pred_check_branch
    %44 = sbr.rel (0) target = $region49
  $region48: #{mnist_vae_forward.1} parent=0 // pred_region
    _
  $region49: #{mnist_vae_forward.1} parent=0 // pred_fallthru
    _
  // Predicated region
  $region50: #{mnist_vae_forward.1} parent=0 // pred_check
    _
  $region51: #{mnist_vae_forward.1} parent=0 // pred_check_branch
    %46 = sbr.rel (0) target = $region53
  $region52: #{mnist_vae_forward.1} parent=0 // pred_region
    _
  $region53: #{mnist_vae_forward.1} parent=0 // pred_fallthru
    _
  // Predicated region
  $region54: #{mnist_vae_forward.1} parent=0 // pred_check
    _
  $region55: #{mnist_vae_forward.1} parent=0 // pred_check_branch
    %48 = sbr.rel (0) target = $region57
  $region56: #{mnist_vae_forward.1} parent=0 // pred_region
    _
  $region57: #{mnist_vae_forward.1} parent=0 // pred_fallthru
    _
  %v50 = vld [vmem:[%s0] sm:$0xff]
  %v51 = vld [vmem:[%s0 + $0x8] sm:$0xff]
  %v52 = vld [vmem:[%s0 + $0x10] sm:$0xff]
  %v53 = vld [vmem:[%s0 + $0x18] sm:$0xff]
  %v54 = vld [vmem:[%s0 + $0x20] sm:$0xff]
  %v55 = vld [vmem:[%s0 + $0x28] sm:$0xff]
  %v56 = vld [vmem:[%s0 + $0x30] sm:$0xff]
  %v57 = vpack.c.bf16 %v50, %v50
  %v58 = vpack.c.bf16 %v51, %v51
  %v59 = vpack.c.bf16 %v52, %v52
  %v60 = vpack.c.bf16 %v53, %v53
  %v61 = vpack.c.bf16 %v54, %v54
  %v62 = vpack.c.bf16 %v55, %v55
  %v63 = vpack.c.bf16 %v56, %v56
  %v64 = vld [vmem:[%s2] sm:$0xf]
  %v65 = vld [vmem:[%s2 + $0x4] sm:$0xf]
  %v66 = vld [vmem:[%s2 + $0x8] sm:$0xf]
  %v67 = vld [vmem:[%s2 + $0xc] sm:$0xf]
  %v68 = vld [vmem:[%s2 + $0x10] sm:$0xf]
  %v69 = vld [vmem:[%s2 + $0x14] sm:$0xf]
  %v70 = vld [vmem:[%s2 + $0x18] sm:$0xf]
  %v71 = vld [vmem:[%s2 + $0x1c] sm:$0xf]
  %v72 = vld [vmem:[%s2 + $0x20] sm:$0xf]
  %v73 = vld [vmem:[%s2 + $0x24] sm:$0xf]
  %v74 = vld [vmem:[%s2 + $0x28] sm:$0xf]
  %v75 = vld [vmem:[%s2 + $0x2c] sm:$0xf]
  %v76 = vld [vmem:[%s2 + $0x30] sm:$0xf]
  %v77 = vld [vmem:[%s2 + $0x34] sm:$0xf]
  %v78 = vld [vmem:[%s2 + $0x38] sm:$0xf]
  %v79 = vld [vmem:[%s2 + $0x3c] sm:$0xf]
  %v80 = vld [vmem:[%s2 + $0x40] sm:$0xf]
  %v81 = vld [vmem:[%s2 + $0x44] sm:$0xf]
  %v82 = vld [vmem:[%s2 + $0x48] sm:$0xf]
  %v83 = vld [vmem:[%s2 + $0x4c] sm:$0xf]
  %v84 = vld [vmem:[%s2 + $0x50] sm:$0xf]
  %v85 = vld [vmem:[%s2 + $0x54] sm:$0xf]
  %v86 = vld [vmem:[%s2 + $0x58] sm:$0xf]
  %v87 = vld [vmem:[%s2 + $0x5c] sm:$0xf]
  %v88 = vld [vmem:[%s2 + $0x60] sm:$0xf]
  %v89 = vld [vmem:[%s2 + $0x64] sm:$0xf]
  %v90 = vld [vmem:[%s2 + $0x68] sm:$0xf]
  %v91 = vld [vmem:[%s2 + $0x6c] sm:$0xf]
  %v92 = vld [vmem:[%s2 + $0x70] sm:$0xf]
  %v93 = vld [vmem:[%s2 + $0x74] sm:$0xf]
  %v94 = vld [vmem:[%s2 + $0x78] sm:$0xf]
  %v95 = vld [vmem:[%s2 + $0x7c] sm:$0xf]
  %v96 = vld [vmem:[%s2 + $0x80] sm:$0xf]
  %v97 = vld [vmem:[%s2 + $0x84] sm:$0xf]
  %v98 = vld [vmem:[%s2 + $0x88] sm:$0xf]
  %v99 = vld [vmem:[%s2 + $0x8c] sm:$0xf]
  %v100 = vld [vmem:[%s2 + $0x90] sm:$0xf]
  %v101 = vld [vmem:[%s2 + $0x94] sm:$0xf]
  %v102 = vld [vmem:[%s2 + $0x98] sm:$0xf]
  %v103 = vld [vmem:[%s2 + $0x9c] sm:$0xf]
  %v104 = vld [vmem:[%s2 + $0xa0] sm:$0xf]
  %v105 = vld [vmem:[%s2 + $0xa4] sm:$0xf]
  %v106 = vld [vmem:[%s2 + $0xa8] sm:$0xf]
  %v107 = vld [vmem:[%s2 + $0xac] sm:$0xf]
  %v108 = vld [vmem:[%s2 + $0xb0] sm:$0xf]
  %v109 = vld [vmem:[%s2 + $0xb4] sm:$0xf]
  %v110 = vld [vmem:[%s2 + $0xb8] sm:$0xf]
  %v111 = vld [vmem:[%s2 + $0xbc] sm:$0xf]
  %v112 = vld [vmem:[%s2 + $0xc0] sm:$0xf]
  %v113 = vld [vmem:[%s2 + $0xc4] sm:$0xf]
  %v114 = vld [vmem:[%s2 + $0xc8] sm:$0xf]
  %v115 = vld [vmem:[%s2 + $0xcc] sm:$0xf]
  %v116 = vld [vmem:[%s2 + $0xd0] sm:$0xf]
  %v117 = vld [vmem:[%s2 + $0xd4] sm:$0xf]
  %v118 = vld [vmem:[%s2 + $0xd8] sm:$0xf]
  %v119 = vld [vmem:[%s2 + $0xdc] sm:$0xf]
  %v120 = vld [vmem:[%s2 + $0xe0] sm:$0xf]
  %v121 = vld [vmem:[%s2 + $0xe4] sm:$0xf]
  %v122 = vld [vmem:[%s2 + $0xe8] sm:$0xf]
  %v123 = vld [vmem:[%s2 + $0xec] sm:$0xf]
  %v124 = vld [vmem:[%s2 + $0xf0] sm:$0xf]
  %v125 = vld [vmem:[%s2 + $0xf4] sm:$0xf]
  %v126 = vld [vmem:[%s2 + $0xf8] sm:$0xf]
  %v127 = vld [vmem:[%s2 + $0xfc] sm:$0xf]
  %v128 = vld [vmem:[%s2 + $0x100] sm:$0xf]
  %v129 = vld [vmem:[%s2 + $0x104] sm:$0xf]
  %v130 = vld [vmem:[%s2 + $0x108] sm:$0xf]
  %v131 = vld [vmem:[%s2 + $0x10c] sm:$0xf]
  %v132 = vld [vmem:[%s2 + $0x110] sm:$0xf]
  %v133 = vld [vmem:[%s2 + $0x114] sm:$0xf]
  %v134 = vld [vmem:[%s2 + $0x118] sm:$0xf]
  %v135 = vld [vmem:[%s2 + $0x11c] sm:$0xf]
  %v136 = vld [vmem:[%s2 + $0x120] sm:$0xf]
  %v137 = vld [vmem:[%s2 + $0x124] sm:$0xf]
  %v138 = vld [vmem:[%s2 + $0x128] sm:$0xf]
  %v139 = vld [vmem:[%s2 + $0x12c] sm:$0xf]
  %v140 = vld [vmem:[%s2 + $0x130] sm:$0xf]
  %v141 = vld [vmem:[%s2 + $0x134] sm:$0xf]
  %v142 = vld [vmem:[%s2 + $0x138] sm:$0xf]
  %v143 = vld [vmem:[%s2 + $0x13c] sm:$0xf]
  %v144 = vld [vmem:[%s2 + $0x140] sm:$0xf]
  %v145 = vld [vmem:[%s2 + $0x144] sm:$0xf]
  %v146 = vld [vmem:[%s2 + $0x148] sm:$0xf]
  %v147 = vld [vmem:[%s2 + $0x14c] sm:$0xf]
  %v148 = vld [vmem:[%s2 + $0x150] sm:$0xf]
  %v149 = vld [vmem:[%s2 + $0x154] sm:$0xf]
  %v150 = vld [vmem:[%s2 + $0x158] sm:$0xf]
  %v151 = vld [vmem:[%s2 + $0x15c] sm:$0xf]
  %v152 = vld [vmem:[%s2 + $0x160] sm:$0xf]
  %v153 = vld [vmem:[%s2 + $0x164] sm:$0xf]
  %v154 = vld [vmem:[%s2 + $0x168] sm:$0xf]
  %v155 = vld [vmem:[%s2 + $0x16c] sm:$0xf]
  %v156 = vld [vmem:[%s2 + $0x170] sm:$0xf]
  %v157 = vld [vmem:[%s2 + $0x174] sm:$0xf]
  %v158 = vld [vmem:[%s2 + $0x178] sm:$0xf]
  %v159 = vld [vmem:[%s2 + $0x17c] sm:$0xf]
  %v160 = vld [vmem:[%s2 + $0x180] sm:$0xf]
  %v161 = vld [vmem:[%s2 + $0x184] sm:$0xf]
  %v162 = vld [vmem:[%s2 + $0x188] sm:$0xf]
  %v163 = vld [vmem:[%s2 + $0x18c] sm:$0xf]
  %v164 = vld [vmem:[%s2 + $0x190] sm:$0xf]
  %v165 = vld [vmem:[%s2 + $0x194] sm:$0xf]
  %v166 = vld [vmem:[%s2 + $0x198] sm:$0xf]
  %v167 = vld [vmem:[%s2 + $0x19c] sm:$0xf]
  %v168 = vld [vmem:[%s2 + $0x1a0] sm:$0xf]
  %v169 = vld [vmem:[%s2 + $0x1a4] sm:$0xf]
  %v170 = vld [vmem:[%s2 + $0x1a8] sm:$0xf]
  %v171 = vld [vmem:[%s2 + $0x1ac] sm:$0xf]
  %v172 = vld [vmem:[%s2 + $0x1b0] sm:$0xf]
  %v173 = vld [vmem:[%s2 + $0x1b4] sm:$0xf]
  %v174 = vld [vmem:[%s2 + $0x1b8] sm:$0xf]
  %v175 = vld [vmem:[%s2 + $0x1bc] sm:$0xf]
  %v176 = vld [vmem:[%s3] sm:$0x1]
  %v178 = vlaneseq
  %v179 = vshrl.u32 %v178, 7
  %v180 = vsub.s32 0, %v179
  %v181 = vrot.slane %v176, %v180
  %v295 = vunpack.c.l.b16 %v64
  %v296 = vunpack.c.l.b16 %v65
  %v297 = vunpack.c.l.b16 %v66
  %v298 = vunpack.c.l.b16 %v67
  %v299 = vunpack.c.l.b16 %v68
  %v300 = vunpack.c.l.b16 %v69
  %v301 = vunpack.c.l.b16 %v70
  %v302 = vunpack.c.l.b16 %v71
  %v303 = vunpack.c.l.b16 %v72
  %v304 = vunpack.c.l.b16 %v73
  %v305 = vunpack.c.l.b16 %v74
  %v306 = vunpack.c.l.b16 %v75
  %v307 = vunpack.c.l.b16 %v76
  %v308 = vunpack.c.l.b16 %v77
  %v309 = vunpack.c.l.b16 %v78
  %v310 = vunpack.c.l.b16 %v79
  %v311 = vunpack.c.l.b16 %v80
  %v312 = vunpack.c.l.b16 %v81
  %v313 = vunpack.c.l.b16 %v82
  %v314 = vunpack.c.l.b16 %v83
  %v315 = vunpack.c.l.b16 %v84
  %v316 = vunpack.c.l.b16 %v85
  %v317 = vunpack.c.l.b16 %v86
  %v318 = vunpack.c.l.b16 %v87
  %v319 = vunpack.c.l.b16 %v88
  %v320 = vunpack.c.l.b16 %v89
  %v321 = vunpack.c.l.b16 %v90
  %v322 = vunpack.c.l.b16 %v91
  %v323 = vunpack.c.l.b16 %v92
  %v324 = vunpack.c.l.b16 %v93
  %v325 = vunpack.c.l.b16 %v94
  %v326 = vunpack.c.l.b16 %v95
  %v327 = vunpack.c.l.b16 %v96
  %v328 = vunpack.c.l.b16 %v97
  %v329 = vunpack.c.l.b16 %v98
  %v330 = vunpack.c.l.b16 %v99
  %v331 = vunpack.c.l.b16 %v100
  %v332 = vunpack.c.l.b16 %v101
  %v333 = vunpack.c.l.b16 %v102
  %v334 = vunpack.c.l.b16 %v103
  %v335 = vunpack.c.l.b16 %v104
  %v336 = vunpack.c.l.b16 %v105
  %v337 = vunpack.c.l.b16 %v106
  %v338 = vunpack.c.l.b16 %v107
  %v339 = vunpack.c.l.b16 %v108
  %v340 = vunpack.c.l.b16 %v109
  %v341 = vunpack.c.l.b16 %v110
  %v342 = vunpack.c.l.b16 %v111
  %v343 = vunpack.c.l.b16 %v112
  %v344 = vunpack.c.l.b16 %v113
  %v345 = vunpack.c.l.b16 %v114
  %v346 = vunpack.c.l.b16 %v115
  %v347 = vunpack.c.l.b16 %v116
  %v348 = vunpack.c.l.b16 %v117
  %v349 = vunpack.c.l.b16 %v118
  %v350 = vunpack.c.l.b16 %v119
  %v351 = vunpack.c.l.b16 %v120
  %v352 = vunpack.c.l.b16 %v121
  %v353 = vunpack.c.l.b16 %v122
  %v354 = vunpack.c.l.b16 %v123
  %v355 = vunpack.c.l.b16 %v124
  %v356 = vunpack.c.l.b16 %v125
  %v357 = vunpack.c.l.b16 %v126
  %v358 = vunpack.c.l.b16 %v127
  %v359 = vunpack.c.l.b16 %v128
  %v360 = vunpack.c.l.b16 %v129
  %v361 = vunpack.c.l.b16 %v130
  %v362 = vunpack.c.l.b16 %v131
  %v363 = vunpack.c.l.b16 %v132
  %v364 = vunpack.c.l.b16 %v133
  %v365 = vunpack.c.l.b16 %v134
  %v366 = vunpack.c.l.b16 %v135
  %v367 = vunpack.c.l.b16 %v136
  %v368 = vunpack.c.l.b16 %v137
  %v369 = vunpack.c.l.b16 %v138
  %v370 = vunpack.c.l.b16 %v139
  %v371 = vunpack.c.l.b16 %v140
  %v372 = vunpack.c.l.b16 %v141
  %v373 = vunpack.c.l.b16 %v142
  %v374 = vunpack.c.l.b16 %v143
  %v375 = vunpack.c.l.b16 %v144
  %v376 = vunpack.c.l.b16 %v145
  %v377 = vunpack.c.l.b16 %v146
  %v378 = vunpack.c.l.b16 %v147
  %v379 = vunpack.c.l.b16 %v148
  %v380 = vunpack.c.l.b16 %v149
  %v381 = vunpack.c.l.b16 %v150
  %v382 = vunpack.c.l.b16 %v151
  %v383 = vunpack.c.l.b16 %v152
  %v384 = vunpack.c.l.b16 %v153
  %v385 = vunpack.c.l.b16 %v154
  %v386 = vunpack.c.l.b16 %v155
  %v387 = vunpack.c.l.b16 %v156
  %v388 = vunpack.c.l.b16 %v157
  %v389 = vunpack.c.l.b16 %v158
  %v390 = vunpack.c.l.b16 %v159
  %v391 = vunpack.c.l.b16 %v160
  %v392 = vunpack.c.l.b16 %v161
  %v393 = vunpack.c.l.b16 %v162
  %v394 = vunpack.c.l.b16 %v163
  %v395 = vunpack.c.l.b16 %v164
  %v396 = vunpack.c.l.b16 %v165
  %v397 = vunpack.c.l.b16 %v166
  %v398 = vunpack.c.l.b16 %v167
  %v399 = vunpack.c.l.b16 %v168
  %v400 = vunpack.c.l.b16 %v169
  %v401 = vunpack.c.l.b16 %v170
  %v402 = vunpack.c.l.b16 %v171
  %v403 = vunpack.c.l.b16 %v172
  %v404 = vunpack.c.l.b16 %v173
  %v405 = vunpack.c.l.b16 %v174
  %v406 = vunpack.c.l.b16 %v175
  %v407 = vpack.c.b16 %v296, %v295
  %v408 = vpack.c.b16 %v298, %v297
  %v409 = vpack.c.b16 %v300, %v299
  %v410 = vpack.c.b16 %v302, %v301
  %v411 = vpack.c.b16 %v304, %v303
  %v412 = vpack.c.b16 %v306, %v305
  %v413 = vpack.c.b16 %v308, %v307
  %v414 = vpack.c.b16 %v310, %v309
  %v415 = vpack.c.b16 %v312, %v311
  %v416 = vpack.c.b16 %v314, %v313
  %v417 = vpack.c.b16 %v316, %v315
  %v418 = vpack.c.b16 %v318, %v317
  %v419 = vpack.c.b16 %v320, %v319
  %v420 = vpack.c.b16 %v322, %v321
  %v421 = vpack.c.b16 %v324, %v323
  %v422 = vpack.c.b16 %v326, %v325
  %v423 = vpack.c.b16 %v328, %v327
  %v424 = vpack.c.b16 %v330, %v329
  %v425 = vpack.c.b16 %v332, %v331
  %v426 = vpack.c.b16 %v334, %v333
  %v427 = vpack.c.b16 %v336, %v335
  %v428 = vpack.c.b16 %v338, %v337
  %v429 = vpack.c.b16 %v340, %v339
  %v430 = vpack.c.b16 %v342, %v341
  %v431 = vpack.c.b16 %v344, %v343
  %v432 = vpack.c.b16 %v346, %v345
  %v433 = vpack.c.b16 %v348, %v347
  %v434 = vpack.c.b16 %v350, %v349
  %v435 = vpack.c.b16 %v352, %v351
  %v436 = vpack.c.b16 %v354, %v353
  %v437 = vpack.c.b16 %v356, %v355
  %v438 = vpack.c.b16 %v358, %v357
  %v439 = vpack.c.b16 %v360, %v359
  %v440 = vpack.c.b16 %v362, %v361
  %v441 = vpack.c.b16 %v364, %v363
  %v442 = vpack.c.b16 %v366, %v365
  %v443 = vpack.c.b16 %v368, %v367
  %v444 = vpack.c.b16 %v370, %v369
  %v445 = vpack.c.b16 %v372, %v371
  %v446 = vpack.c.b16 %v374, %v373
  %v447 = vpack.c.b16 %v376, %v375
  %v448 = vpack.c.b16 %v378, %v377
  %v449 = vpack.c.b16 %v380, %v379
  %v450 = vpack.c.b16 %v382, %v381
  %v451 = vpack.c.b16 %v384, %v383
  %v452 = vpack.c.b16 %v386, %v385
  %v453 = vpack.c.b16 %v388, %v387
  %v454 = vpack.c.b16 %v390, %v389
  %v455 = vpack.c.b16 %v392, %v391
  %v456 = vpack.c.b16 %v394, %v393
  %v457 = vpack.c.b16 %v396, %v395
  %v458 = vpack.c.b16 %v398, %v397
  %v459 = vpack.c.b16 %v400, %v399
  %v460 = vpack.c.b16 %v402, %v401
  %v461 = vpack.c.b16 %v404, %v403
  %v462 = vpack.c.b16 %v406, %v405
  %519 = vmatprep.subr.bf16.mxu0 0
  %520 = vmatpush1.bf16.msra.mxu0 %v414
  %521 = vmatprep.subr.bf16.mxu0 0
  %522 = vmatpush1.bf16.msra.mxu0 %v413
  %523 = vmatprep.subr.bf16.mxu0 0
  %524 = vmatpush1.bf16.msra.mxu0 %v412
  %525 = vmatprep.subr.bf16.mxu0 0
  %526 = vmatpush1.bf16.msra.mxu0 %v411
  %527 = vmatprep.subr.bf16.mxu0 0
  %528 = vmatpush1.bf16.msra.mxu0 %v410
  %529 = vmatprep.subr.bf16.mxu0 0
  %530 = vmatpush1.bf16.msra.mxu0 %v409
  %531 = vmatprep.subr.bf16.mxu0 0
  %532 = vmatpush1.bf16.msra.mxu0 %v408
  %533 = vmatprep.subr.bf16.mxu0 0
  %534 = vmatpush1.bf16.msra.mxu0 %v407
  %535 = vmatprep.subr.bf16.mxu0 0
  %536 = vmatpush2.bf16.msra.mxu0 %v422
  %537 = vmatprep.subr.bf16.mxu0 0
  %538 = vmatpush2.bf16.msra.mxu0 %v421
  %539 = vmatprep.subr.bf16.mxu0 0
  %540 = vmatpush2.bf16.msra.mxu0 %v420
  %541 = vmatprep.subr.bf16.mxu0 0
  %542 = vmatpush2.bf16.msra.mxu0 %v419
  %543 = vmatprep.subr.bf16.mxu0 0
  %544 = vmatpush2.bf16.msra.mxu0 %v418
  %545 = vmatprep.subr.bf16.mxu0 0
  %546 = vmatpush2.bf16.msra.mxu0 %v417
  %547 = vmatprep.subr.bf16.mxu0 0
  %548 = vmatpush2.bf16.msra.mxu0 %v416
  %549 = vmatprep.subr.bf16.mxu0 0
  %550 = vmatpush2.bf16.msra.mxu0 %v415
  %551 = vmatprep.mubr.bf16.mxu0 %v58
  %552 = vmatmul.mubr.bf16.gmra.mxu0 %v57
  %v553 = vpop.f32.mrf.mxu0
  %v554 = vadd.f32 %v181, %v553
  %v555 = vpop.f32.mrf.mxu0
  %v556 = vpop.f32.mrf.mxu0
  %v557 = vpop.f32.mrf.mxu0
  %558 = vdwg.mxu0
  %559 = vmatprep.subr.bf16.mxu0 0
  %560 = vmatpush1.bf16.msra.mxu0 %v430
  %561 = vmatprep.subr.bf16.mxu0 0
  %562 = vmatpush1.bf16.msra.mxu0 %v429
  %563 = vmatprep.subr.bf16.mxu0 0
  %564 = vmatpush1.bf16.msra.mxu0 %v428
  %565 = vmatprep.subr.bf16.mxu0 0
  %566 = vmatpush1.bf16.msra.mxu0 %v427
  %567 = vmatprep.subr.bf16.mxu0 0
  %568 = vmatpush1.bf16.msra.mxu0 %v426
  %569 = vmatprep.subr.bf16.mxu0 0
  %570 = vmatpush1.bf16.msra.mxu0 %v425
  %571 = vmatprep.subr.bf16.mxu0 0
  %572 = vmatpush1.bf16.msra.mxu0 %v424
  %573 = vmatprep.subr.bf16.mxu0 0
  %574 = vmatpush1.bf16.msra.mxu0 %v423
  %575 = vmatprep.subr.bf16.mxu0 0
  %576 = vmatpush2.bf16.msra.mxu0 %v438
  %577 = vmatprep.subr.bf16.mxu0 0
  %578 = vmatpush2.bf16.msra.mxu0 %v437
  %579 = vmatprep.subr.bf16.mxu0 0
  %580 = vmatpush2.bf16.msra.mxu0 %v436
  %581 = vmatprep.subr.bf16.mxu0 0
  %582 = vmatpush2.bf16.msra.mxu0 %v435
  %583 = vmatprep.subr.bf16.mxu0 0
  %584 = vmatpush2.bf16.msra.mxu0 %v434
  %585 = vmatprep.subr.bf16.mxu0 0
  %586 = vmatpush2.bf16.msra.mxu0 %v433
  %587 = vmatprep.subr.bf16.mxu0 0
  %588 = vmatpush2.bf16.msra.mxu0 %v432
  %589 = vmatprep.subr.bf16.mxu0 0
  %590 = vmatpush2.bf16.msra.mxu0 %v431
  %591 = vmatprep.mubr.bf16.mxu0 %v60
  %592 = vmatmul.mubr.bf16.gmra.mxu0 %v59
  %v593 = vpop.f32.mrf.mxu0
  %v594 = vadd.f32 %v554, %v593
  %v595 = vpop.f32.mrf.mxu0
  %v596 = vpop.f32.mrf.mxu0
  %v597 = vpop.f32.mrf.mxu0
  %598 = vdwg.mxu0
  %599 = vmatprep.subr.bf16.mxu0 0
  %600 = vmatpush1.bf16.msra.mxu0 %v446
  %601 = vmatprep.subr.bf16.mxu0 0
  %602 = vmatpush1.bf16.msra.mxu0 %v445
  %603 = vmatprep.subr.bf16.mxu0 0
  %604 = vmatpush1.bf16.msra.mxu0 %v444
  %605 = vmatprep.subr.bf16.mxu0 0
  %606 = vmatpush1.bf16.msra.mxu0 %v443
  %607 = vmatprep.subr.bf16.mxu0 0
  %608 = vmatpush1.bf16.msra.mxu0 %v442
  %609 = vmatprep.subr.bf16.mxu0 0
  %610 = vmatpush1.bf16.msra.mxu0 %v441
  %611 = vmatprep.subr.bf16.mxu0 0
  %612 = vmatpush1.bf16.msra.mxu0 %v440
  %613 = vmatprep.subr.bf16.mxu0 0
  %614 = vmatpush1.bf16.msra.mxu0 %v439
  %615 = vmatprep.subr.bf16.mxu0 0
  %616 = vmatpush2.bf16.msra.mxu0 %v454
  %617 = vmatprep.subr.bf16.mxu0 0
  %618 = vmatpush2.bf16.msra.mxu0 %v453
  %619 = vmatprep.subr.bf16.mxu0 0
  %620 = vmatpush2.bf16.msra.mxu0 %v452
  %621 = vmatprep.subr.bf16.mxu0 0
  %622 = vmatpush2.bf16.msra.mxu0 %v451
  %623 = vmatprep.subr.bf16.mxu0 0
  %624 = vmatpush2.bf16.msra.mxu0 %v450
  %625 = vmatprep.subr.bf16.mxu0 0
  %626 = vmatpush2.bf16.msra.mxu0 %v449
  %627 = vmatprep.subr.bf16.mxu0 0
  %628 = vmatpush2.bf16.msra.mxu0 %v448
  %629 = vmatprep.subr.bf16.mxu0 0
  %630 = vmatpush2.bf16.msra.mxu0 %v447
  %631 = vmatprep.mubr.bf16.mxu0 %v62
  %632 = vmatmul.mubr.bf16.gmra.mxu0 %v61
  %v633 = vpop.f32.mrf.mxu0
  %v634 = vadd.f32 %v594, %v633
  %v635 = vpop.f32.mrf.mxu0
  %v636 = vpop.f32.mrf.mxu0
  %v637 = vpop.f32.mrf.mxu0
  %638 = vdwg.mxu0
  %639 = vmatprep.subr.bf16.mxu0 0
  %640 = vmatpush1.bf16.msra.mxu0 %v462
  %641 = vmatprep.subr.bf16.mxu0 0
  %642 = vmatpush1.bf16.msra.mxu0 %v461
  %643 = vmatprep.subr.bf16.mxu0 0
  %644 = vmatpush1.bf16.msra.mxu0 %v460
  %645 = vmatprep.subr.bf16.mxu0 0
  %646 = vmatpush1.bf16.msra.mxu0 %v459
  %647 = vmatprep.subr.bf16.mxu0 0
  %648 = vmatpush1.bf16.msra.mxu0 %v458
  %649 = vmatprep.subr.bf16.mxu0 0
  %650 = vmatpush1.bf16.msra.mxu0 %v457
  %651 = vmatprep.subr.bf16.mxu0 0
  %652 = vmatpush1.bf16.msra.mxu0 %v456
  %653 = vmatprep.subr.bf16.mxu0 0
  %654 = vmatpush1.bf16.msra.mxu0 %v455
  %655 = vmatprep.subr.bf16.mxu0 0
  %656 = vmatpush2.bf16.msra.mxu0 0
  %657 = vmatprep.subr.bf16.mxu0 0
  %658 = vmatpush2.bf16.msra.mxu0 0
  %659 = vmatprep.subr.bf16.mxu0 0
  %660 = vmatpush2.bf16.msra.mxu0 0
  %661 = vmatprep.subr.bf16.mxu0 0
  %662 = vmatpush2.bf16.msra.mxu0 0
  %663 = vmatprep.subr.bf16.mxu0 0
  %664 = vmatpush2.bf16.msra.mxu0 0
  %665 = vmatprep.subr.bf16.mxu0 0
  %666 = vmatpush2.bf16.msra.mxu0 0
  %667 = vmatprep.subr.bf16.mxu0 0
  %668 = vmatpush2.bf16.msra.mxu0 0
  %669 = vmatprep.subr.bf16.mxu0 0
  %670 = vmatpush2.bf16.msra.mxu0 0
  %671 = vmatprep.mubr.bf16.mxu0 0
  %672 = vmatmul.mubr.bf16.gmra.mxu0 %v63
  %v673 = vpop.f32.mrf.mxu0
  %v674 = vadd.f32 %v634, %v673
  %v675 = vpop.f32.mrf.mxu0
  %v676 = vpop.f32.mrf.mxu0
  %v677 = vpop.f32.mrf.mxu0
  %678 = vdwg.mxu0
  %v679 = vmax.f32 %v674, 0.0
  %v680 = vpack.c.bf16 %v679, %v679
  %v681 = vld [vmem:[%s4] sm:$0xf]
  %v682 = vld [vmem:[%s4 + $0x4] sm:$0xf]
  %v683 = vld [vmem:[%s4 + $0x8] sm:$0xf]
  %v684 = vld [vmem:[%s4 + $0xc] sm:$0xf]
  %v685 = vld [vmem:[%s4 + $0x10] sm:$0xf]
  %v686 = vld [vmem:[%s4 + $0x14] sm:$0xf]
  %v687 = vld [vmem:[%s4 + $0x18] sm:$0xf]
  %v688 = vld [vmem:[%s4 + $0x1c] sm:$0xf]
  %v689 = vld [vmem:[%s5] sm:$0x1]
  %v691 = vlaneseq
  %v692 = vshrl.u32 %v691, 7
  %v693 = vsub.s32 0, %v692
  %v694 = vrot.slane %v689, %v693
  %v704 = vunpack.c.l.b16 %v681
  %v705 = vunpack.c.l.b16 %v682
  %v706 = vunpack.c.l.b16 %v683
  %v707 = vunpack.c.l.b16 %v684
  %v708 = vunpack.c.l.b16 %v685
  %v709 = vunpack.c.l.b16 %v686
  %v710 = vunpack.c.l.b16 %v687
  %v711 = vunpack.c.l.b16 %v688
  %v712 = vpack.c.b16 %v705, %v704
  %v713 = vpack.c.b16 %v707, %v706
  %v714 = vpack.c.b16 %v709, %v708
  %v715 = vpack.c.b16 %v711, %v710
  %vm720 = vcmask 523264
  %v722 = vsel %vm720, %v680, 0
  %724 = vmatprep.subr.bf16.mxu0 0
  %725 = vmatpush1.bf16.msra.mxu0 0
  %726 = vmatprep.subr.bf16.mxu0 0
  %727 = vmatpush1.bf16.msra.mxu0 0
  %728 = vmatprep.subr.bf16.mxu0 0
  %729 = vmatpush1.bf16.msra.mxu0 0
  %730 = vmatprep.subr.bf16.mxu0 0
  %731 = vmatpush1.bf16.msra.mxu0 0
  %732 = vmatprep.subr.bf16.mxu0 0
  %733 = vmatpush1.bf16.msra.mxu0 %v715
  %734 = vmatprep.subr.bf16.mxu0 0
  %735 = vmatpush1.bf16.msra.mxu0 %v714
  %736 = vmatprep.subr.bf16.mxu0 0
  %737 = vmatpush1.bf16.msra.mxu0 %v713
  %738 = vmatprep.subr.bf16.mxu0 0
  %739 = vmatpush1.bf16.msra.mxu0 %v712
  %740 = vmatprep.subr.bf16.mxu0 0
  %741 = vmatpush2.bf16.msra.mxu0 0
  %742 = vmatprep.subr.bf16.mxu0 0
  %743 = vmatpush2.bf16.msra.mxu0 0
  %744 = vmatprep.subr.bf16.mxu0 0
  %745 = vmatpush2.bf16.msra.mxu0 0
  %746 = vmatprep.subr.bf16.mxu0 0
  %747 = vmatpush2.bf16.msra.mxu0 0
  %748 = vmatprep.subr.bf16.mxu0 0
  %749 = vmatpush2.bf16.msra.mxu0 0
  %750 = vmatprep.subr.bf16.mxu0 0
  %751 = vmatpush2.bf16.msra.mxu0 0
  %752 = vmatprep.subr.bf16.mxu0 0
  %753 = vmatpush2.bf16.msra.mxu0 0
  %754 = vmatprep.subr.bf16.mxu0 0
  %755 = vmatpush2.bf16.msra.mxu0 0
  %756 = vmatprep.mubr.bf16.mxu0 0
  %757 = vmatmul.mubr.bf16.gmra.mxu0 %v722
  %v758 = vpop.f32.mrf.mxu0
  %v759 = vadd.f32 %v694, %v758
  %v760 = vpop.f32.mrf.mxu0
  %v761 = vpop.f32.mrf.mxu0
  %v762 = vpop.f32.mrf.mxu0
  %763 = vdwg.mxu0
  %v764 = vmul.f32 %v759, 0.5
  %v765 = vmul.f32 %v764, 1.442695
  %v766 = vpow.pop %v765
  %v767 = vld [vmem:[%s1] sm:$0xff]
  %769 = vrot.lane.b32.xlu0 %v766, 112
  %v770 = vpop.permute.xlu0 %769
  %v772 = vmul.f32 %v767, %v770
  %v773 = vadd.f32 %v759, %v772
  %v774 = vpack.c.bf16 %v773, %v773
  %v775 = vld [vmem:[%s6] sm:$0xf]
  %v776 = vld [vmem:[%s6 + $0x4] sm:$0xf]
  %v777 = vld [vmem:[%s7] sm:$0x1]
  %v779 = vlaneseq
  %v780 = vshrl.u32 %v779, 7
  %v781 = vsub.s32 0, %v780
  %v782 = vrot.slane %v777, %v781
  %v786 = vunpack.c.l.b16 %v775
  %v787 = vunpack.c.l.b16 %v776
  %v788 = vpack.c.b16 %v787, %v786
  %vm790 = vcmask 130048
  %v792 = vsel %vm790, %v774, 0
  %794 = vmatprep.subr.bf16.mxu0 0
  %795 = vmatpush1.bf16.msra.mxu0 0
  %796 = vmatprep.subr.bf16.mxu0 0
  %797 = vmatpush1.bf16.msra.mxu0 0
  %798 = vmatprep.subr.bf16.mxu0 0
  %799 = vmatpush1.bf16.msra.mxu0 0
  %800 = vmatprep.subr.bf16.mxu0 0
  %801 = vmatpush1.bf16.msra.mxu0 0
  %802 = vmatprep.subr.bf16.mxu0 0
  %803 = vmatpush1.bf16.msra.mxu0 0
  %804 = vmatprep.subr.bf16.mxu0 0
  %805 = vmatpush1.bf16.msra.mxu0 0
  %806 = vmatprep.subr.bf16.mxu0 0
  %807 = vmatpush1.bf16.msra.mxu0 0
  %808 = vmatprep.subr.bf16.mxu0 0
  %809 = vmatpush1.bf16.msra.mxu0 %v788
  %810 = vmatprep.subr.bf16.mxu0 0
  %811 = vmatpush2.bf16.msra.mxu0 0
  %812 = vmatprep.subr.bf16.mxu0 0
  %813 = vmatpush2.bf16.msra.mxu0 0
  %814 = vmatprep.subr.bf16.mxu0 0
  %815 = vmatpush2.bf16.msra.mxu0 0
  %816 = vmatprep.subr.bf16.mxu0 0
  %817 = vmatpush2.bf16.msra.mxu0 0
  %818 = vmatprep.subr.bf16.mxu0 0
  %819 = vmatpush2.bf16.msra.mxu0 0
  %820 = vmatprep.subr.bf16.mxu0 0
  %821 = vmatpush2.bf16.msra.mxu0 0
  %822 = vmatprep.subr.bf16.mxu0 0
  %823 = vmatpush2.bf16.msra.mxu0 0
  %824 = vmatprep.subr.bf16.mxu0 0
  %825 = vmatpush2.bf16.msra.mxu0 0
  %826 = vmatprep.mubr.bf16.mxu0 0
  %827 = vmatmul.mubr.bf16.gmra.mxu0 %v792
  %v828 = vpop.f32.mrf.mxu0
  %v829 = vadd.f32 %v782, %v828
  %v830 = vpop.f32.mrf.mxu0
  %v831 = vpop.f32.mrf.mxu0
  %v832 = vpop.f32.mrf.mxu0
  %833 = vdwg.mxu0
  %v834 = vmax.f32 %v829, 0.0
  %v835 = vpack.c.bf16 %v834, %v834
  %v836 = vld [vmem:[%s8] sm:$0xf]
  %v837 = vld [vmem:[%s8 + $0x4] sm:$0xf]
  %v838 = vld [vmem:[%s8 + $0x8] sm:$0xf]
  %v839 = vld [vmem:[%s8 + $0xc] sm:$0xf]
  %v840 = vld [vmem:[%s9] sm:$0x1]
  %v842 = vlaneseq
  %v843 = vshrl.u32 %v842, 7
  %v844 = vsub.s32 0, %v843
  %v845 = vrot.slane %v840, %v844
  %v851 = vunpack.c.l.b16 %v836
  %v852 = vunpack.c.l.b16 %v837
  %v853 = vunpack.c.l.b16 %v838
  %v854 = vunpack.c.l.b16 %v839
  %v855 = vpack.c.b16 %v852, %v851
  %v856 = vpack.c.b16 %v854, %v853
  %vm859 = vcmask 261120
  %v861 = vsel %vm859, %v835, 0
  %863 = vmatprep.subr.bf16.mxu0 0
  %864 = vmatpush1.bf16.msra.mxu0 0
  %865 = vmatprep.subr.bf16.mxu0 0
  %866 = vmatpush1.bf16.msra.mxu0 0
  %867 = vmatprep.subr.bf16.mxu0 0
  %868 = vmatpush1.bf16.msra.mxu0 0
  %869 = vmatprep.subr.bf16.mxu0 0
  %870 = vmatpush1.bf16.msra.mxu0 0
  %871 = vmatprep.subr.bf16.mxu0 0
  %872 = vmatpush1.bf16.msra.mxu0 0
  %873 = vmatprep.subr.bf16.mxu0 0
  %874 = vmatpush1.bf16.msra.mxu0 0
  %875 = vmatprep.subr.bf16.mxu0 0
  %876 = vmatpush1.bf16.msra.mxu0 %v856
  %877 = vmatprep.subr.bf16.mxu0 0
  %878 = vmatpush1.bf16.msra.mxu0 %v855
  %879 = vmatprep.subr.bf16.mxu0 0
  %880 = vmatpush2.bf16.msra.mxu0 0
  %881 = vmatprep.subr.bf16.mxu0 0
  %882 = vmatpush2.bf16.msra.mxu0 0
  %883 = vmatprep.subr.bf16.mxu0 0
  %884 = vmatpush2.bf16.msra.mxu0 0
  %885 = vmatprep.subr.bf16.mxu0 0
  %886 = vmatpush2.bf16.msra.mxu0 0
  %887 = vmatprep.subr.bf16.mxu0 0
  %888 = vmatpush2.bf16.msra.mxu0 0
  %889 = vmatprep.subr.bf16.mxu0 0
  %890 = vmatpush2.bf16.msra.mxu0 0
  %891 = vmatprep.subr.bf16.mxu0 0
  %892 = vmatpush2.bf16.msra.mxu0 0
  %893 = vmatprep.subr.bf16.mxu0 0
  %894 = vmatpush2.bf16.msra.mxu0 0
  %895 = vmatprep.mubr.bf16.mxu0 0
  %896 = vmatmul.mubr.bf16.gmra.mxu0 %v861
  %v897 = vpop.f32.mrf.mxu0
  %v898 = vadd.f32 %v845, %v897
  %v899 = vpop.f32.mrf.mxu0
  %v900 = vpop.f32.mrf.mxu0
  %v901 = vpop.f32.mrf.mxu0
  %902 = vdwg.mxu0
  %v903 = vmax.f32 %v898, 0.0
  %v904 = vpack.c.bf16 %v903, %v903
  %v905 = vld [vmem:[%s10] sm:$0xf]
  %v906 = vld [vmem:[%s10 + $0x4] sm:$0xf]
  %v907 = vld [vmem:[%s10 + $0x8] sm:$0xf]
  %v908 = vld [vmem:[%s10 + $0xc] sm:$0xf]
  %v909 = vld [vmem:[%s10 + $0x10] sm:$0xf]
  %v910 = vld [vmem:[%s10 + $0x14] sm:$0xf]
  %v911 = vld [vmem:[%s10 + $0x18] sm:$0xf]
  %v912 = vld [vmem:[%s10 + $0x1c] sm:$0xf]
  %v913 = vld [vmem:[%s11] sm:$0x1]
  %v915 = vlaneseq
  %v916 = vshrl.u32 %v915, 7
  %v917 = vsub.s32 0, %v916
  %v918 = vrot.slane %v913, %v917
  %v928 = vunpack.c.l.b16 %v905
  %v929 = vunpack.c.l.b16 %v906
  %v930 = vunpack.c.l.b16 %v907
  %v931 = vunpack.c.l.b16 %v908
  %v932 = vunpack.c.l.b16 %v909
  %v933 = vunpack.c.l.b16 %v910
  %v934 = vunpack.c.l.b16 %v911
  %v935 = vunpack.c.l.b16 %v912
  %v936 = vpack.c.b16 %v929, %v928
  %v937 = vpack.c.b16 %v931, %v930
  %v938 = vpack.c.b16 %v933, %v932
  %v939 = vpack.c.b16 %v935, %v934
  %v945 = vsel %vm720, %v904, 0
  %947 = vmatprep.subr.bf16.mxu0 0
  %948 = vmatpush1.bf16.msra.mxu0 0
  %949 = vmatprep.subr.bf16.mxu0 0
  %950 = vmatpush1.bf16.msra.mxu0 0
  %951 = vmatprep.subr.bf16.mxu0 0
  %952 = vmatpush1.bf16.msra.mxu0 0
  %953 = vmatprep.subr.bf16.mxu0 0
  %954 = vmatpush1.bf16.msra.mxu0 0
  %955 = vmatprep.subr.bf16.mxu0 0
  %956 = vmatpush1.bf16.msra.mxu0 %v939
  %957 = vmatprep.subr.bf16.mxu0 0
  %958 = vmatpush1.bf16.msra.mxu0 %v938
  %959 = vmatprep.subr.bf16.mxu0 0
  %960 = vmatpush1.bf16.msra.mxu0 %v937
  %961 = vmatprep.subr.bf16.mxu0 0
  %962 = vmatpush1.bf16.msra.mxu0 %v936
  %963 = vmatprep.subr.bf16.mxu0 0
  %964 = vmatpush2.bf16.msra.mxu0 0
  %965 = vmatprep.subr.bf16.mxu0 0
  %966 = vmatpush2.bf16.msra.mxu0 0
  %967 = vmatprep.subr.bf16.mxu0 0
  %968 = vmatpush2.bf16.msra.mxu0 0
  %969 = vmatprep.subr.bf16.mxu0 0
  %970 = vmatpush2.bf16.msra.mxu0 0
  %971 = vmatprep.subr.bf16.mxu0 0
  %972 = vmatpush2.bf16.msra.mxu0 0
  %973 = vmatprep.subr.bf16.mxu0 0
  %974 = vmatpush2.bf16.msra.mxu0 0
  %975 = vmatprep.subr.bf16.mxu0 0
  %976 = vmatpush2.bf16.msra.mxu0 0
  %977 = vmatprep.subr.bf16.mxu0 0
  %978 = vmatpush2.bf16.msra.mxu0 0
  %979 = vmatprep.mubr.bf16.mxu0 0
  %980 = vmatmul.mubr.bf16.gmra.mxu0 %v945
  %v981 = vpop.f32.mrf.mxu0
  %v982 = vadd.f32 %v918, %v981
  %v983 = vpop.f32.mrf.mxu0
  %v984 = vpop.f32.mrf.mxu0
  %v985 = vpop.f32.mrf.mxu0
  %986 = vdwg.mxu0
  %v987 = vmax.f32 %v982, 0.0
  %v988 = vpack.c.bf16 %v987, %v987
  %v989 = vld [vmem:[%s12] sm:$0xff]
  %v990 = vld [vmem:[%s12 + $0x8] sm:$0xff]
  %v991 = vld [vmem:[%s12 + $0x10] sm:$0xff]
  %v992 = vld [vmem:[%s12 + $0x18] sm:$0xf]
  %v993 = vld [vmem:[%s12 + $0x1c] sm:$0xff]
  %v994 = vld [vmem:[%s12 + $0x24] sm:$0xff]
  %v995 = vld [vmem:[%s12 + $0x2c] sm:$0xff]
  %v996 = vld [vmem:[%s12 + $0x34] sm:$0xf]
  %v997 = vld [vmem:[%s12 + $0x38] sm:$0xff]
  %v998 = vld [vmem:[%s12 + $0x40] sm:$0xff]
  %v999 = vld [vmem:[%s12 + $0x48] sm:$0xff]
  %v1000 = vld [vmem:[%s12 + $0x50] sm:$0xf]
  %v1001 = vld [vmem:[%s12 + $0x54] sm:$0xff]
  %v1002 = vld [vmem:[%s12 + $0x5c] sm:$0xff]
  %v1003 = vld [vmem:[%s12 + $0x64] sm:$0xff]
  %v1004 = vld [vmem:[%s12 + $0x6c] sm:$0xf]
  %v1005 = vld [vmem:[%s12 + $0x70] sm:$0xff]
  %v1006 = vld [vmem:[%s12 + $0x78] sm:$0xff]
  %v1007 = vld [vmem:[%s12 + $0x80] sm:$0xff]
  %v1008 = vld [vmem:[%s12 + $0x88] sm:$0xf]
  %v1009 = vld [vmem:[%s12 + $0x8c] sm:$0xff]
  %v1010 = vld [vmem:[%s12 + $0x94] sm:$0xff]
  %v1011 = vld [vmem:[%s12 + $0x9c] sm:$0xff]
  %v1012 = vld [vmem:[%s12 + $0xa4] sm:$0xf]
  %v1013 = vld [vmem:[%s12 + $0xa8] sm:$0xff]
  %v1014 = vld [vmem:[%s12 + $0xb0] sm:$0xff]
  %v1015 = vld [vmem:[%s12 + $0xb8] sm:$0xff]
  %v1016 = vld [vmem:[%s12 + $0xc0] sm:$0xf]
  %v1017 = vld [vmem:[%s12 + $0xc4] sm:$0xff]
  %v1018 = vld [vmem:[%s12 + $0xcc] sm:$0xff]
  %v1019 = vld [vmem:[%s12 + $0xd4] sm:$0xff]
  %v1020 = vld [vmem:[%s12 + $0xdc] sm:$0xf]
  %v1021 = vld [vmem:[%s12 + $0xe0] sm:$0xff]
  %v1022 = vld [vmem:[%s12 + $0xe8] sm:$0xff]
  %v1023 = vld [vmem:[%s12 + $0xf0] sm:$0xff]
  %v1024 = vld [vmem:[%s12 + $0xf8] sm:$0xf]
  %v1025 = vld [vmem:[%s12 + $0xfc] sm:$0xff]
  %v1026 = vld [vmem:[%s12 + $0x104] sm:$0xff]
  %v1027 = vld [vmem:[%s12 + $0x10c] sm:$0xff]
  %v1028 = vld [vmem:[%s12 + $0x114] sm:$0xf]
  %v1029 = vld [vmem:[%s12 + $0x118] sm:$0xff]
  %v1030 = vld [vmem:[%s12 + $0x120] sm:$0xff]
  %v1031 = vld [vmem:[%s12 + $0x128] sm:$0xff]
  %v1032 = vld [vmem:[%s12 + $0x130] sm:$0xf]
  %v1033 = vld [vmem:[%s12 + $0x134] sm:$0xff]
  %v1034 = vld [vmem:[%s12 + $0x13c] sm:$0xff]
  %v1035 = vld [vmem:[%s12 + $0x144] sm:$0xff]
  %v1036 = vld [vmem:[%s12 + $0x14c] sm:$0xf]
  %v1037 = vld [vmem:[%s12 + $0x150] sm:$0xff]
  %v1038 = vld [vmem:[%s12 + $0x158] sm:$0xff]
  %v1039 = vld [vmem:[%s12 + $0x160] sm:$0xff]
  %v1040 = vld [vmem:[%s12 + $0x168] sm:$0xf]
  %v1041 = vld [vmem:[%s12 + $0x16c] sm:$0xff]
  %v1042 = vld [vmem:[%s12 + $0x174] sm:$0xff]
  %v1043 = vld [vmem:[%s12 + $0x17c] sm:$0xff]
  %v1044 = vld [vmem:[%s12 + $0x184] sm:$0xf]
  %v1045 = vld [vmem:[%s12 + $0x188] sm:$0xff]
  %v1046 = vld [vmem:[%s12 + $0x190] sm:$0xff]
  %v1047 = vld [vmem:[%s12 + $0x198] sm:$0xff]
  %v1048 = vld [vmem:[%s12 + $0x1a0] sm:$0xf]
  %v1049 = vld [vmem:[%s12 + $0x1a4] sm:$0xff]
  %v1050 = vld [vmem:[%s12 + $0x1ac] sm:$0xff]
  %v1051 = vld [vmem:[%s12 + $0x1b4] sm:$0xff]
  %v1052 = vld [vmem:[%s12 + $0x1bc] sm:$0xf]
  %v1053 = vld [vmem:[%s13] sm:$0xff]
  %v1055 = vlaneseq
  %v1056 = vshrl.u32 %v1055, 7
  %v1057 = vsub.s32 0, %v1056
  %v1058 = vrot.slane %v1053, %v1057
  %v1059 = vlaneseq
  %v1060 = vshrl.u32 %v1059, 7
  %v1061 = vsub.s32 1, %v1060
  %v1062 = vrot.slane %v1053, %v1061
  %v1063 = vlaneseq
  %v1064 = vshrl.u32 %v1063, 7
  %v1065 = vsub.s32 2, %v1064
  %v1066 = vrot.slane %v1053, %v1065
  %v1067 = vlaneseq
  %v1068 = vshrl.u32 %v1067, 7
  %v1069 = vsub.s32 3, %v1068
  %v1070 = vrot.slane %v1053, %v1069
  %v1071 = vlaneseq
  %v1072 = vshrl.u32 %v1071, 7
  %v1073 = vsub.s32 4, %v1072
  %v1074 = vrot.slane %v1053, %v1073
  %v1075 = vlaneseq
  %v1076 = vshrl.u32 %v1075, 7
  %v1077 = vsub.s32 5, %v1076
  %v1078 = vrot.slane %v1053, %v1077
  %v1079 = vlaneseq
  %v1080 = vshrl.u32 %v1079, 7
  %v1081 = vsub.s32 6, %v1080
  %v1082 = vrot.slane %v1053, %v1081
  %v1154 = vunpack.c.l.b16 %v989
  %v1155 = vunpack.c.h.b16 %v989
  %v1156 = vunpack.c.l.b16 %v990
  %v1157 = vunpack.c.h.b16 %v990
  %v1158 = vunpack.c.l.b16 %v991
  %v1159 = vunpack.c.h.b16 %v991
  %v1160 = vunpack.c.l.b16 %v992
  %v1161 = vunpack.c.l.b16 %v993
  %v1162 = vunpack.c.h.b16 %v993
  %v1163 = vunpack.c.l.b16 %v994
  %v1164 = vunpack.c.h.b16 %v994
  %v1165 = vunpack.c.l.b16 %v995
  %v1166 = vunpack.c.h.b16 %v995
  %v1167 = vunpack.c.l.b16 %v996
  %v1168 = vunpack.c.l.b16 %v997
  %v1169 = vunpack.c.h.b16 %v997
  %v1170 = vunpack.c.l.b16 %v998
  %v1171 = vunpack.c.h.b16 %v998
  %v1172 = vunpack.c.l.b16 %v999
  %v1173 = vunpack.c.h.b16 %v999
  %v1174 = vunpack.c.l.b16 %v1000
  %v1175 = vunpack.c.l.b16 %v1001
  %v1176 = vunpack.c.h.b16 %v1001
  %v1177 = vunpack.c.l.b16 %v1002
  %v1178 = vunpack.c.h.b16 %v1002
  %v1179 = vunpack.c.l.b16 %v1003
  %v1180 = vunpack.c.h.b16 %v1003
  %v1181 = vunpack.c.l.b16 %v1004
  %v1182 = vunpack.c.l.b16 %v1005
  %v1183 = vunpack.c.h.b16 %v1005
  %v1184 = vunpack.c.l.b16 %v1006
  %v1185 = vunpack.c.h.b16 %v1006
  %v1186 = vunpack.c.l.b16 %v1007
  %v1187 = vunpack.c.h.b16 %v1007
  %v1188 = vunpack.c.l.b16 %v1008
  %v1189 = vunpack.c.l.b16 %v1009
  %v1190 = vunpack.c.h.b16 %v1009
  %v1191 = vunpack.c.l.b16 %v1010
  %v1192 = vunpack.c.h.b16 %v1010
  %v1193 = vunpack.c.l.b16 %v1011
  %v1194 = vunpack.c.h.b16 %v1011
  %v1195 = vunpack.c.l.b16 %v1012
  %v1196 = vunpack.c.l.b16 %v1013
  %v1197 = vunpack.c.h.b16 %v1013
  %v1198 = vunpack.c.l.b16 %v1014
  %v1199 = vunpack.c.h.b16 %v1014
  %v1200 = vunpack.c.l.b16 %v1015
  %v1201 = vunpack.c.h.b16 %v1015
  %v1202 = vunpack.c.l.b16 %v1016
  %v1203 = vunpack.c.l.b16 %v1017
  %v1204 = vunpack.c.h.b16 %v1017
  %v1205 = vunpack.c.l.b16 %v1018
  %v1206 = vunpack.c.h.b16 %v1018
  %v1207 = vunpack.c.l.b16 %v1019
  %v1208 = vunpack.c.h.b16 %v1019
  %v1209 = vunpack.c.l.b16 %v1020
  %v1210 = vunpack.c.l.b16 %v1021
  %v1211 = vunpack.c.h.b16 %v1021
  %v1212 = vunpack.c.l.b16 %v1022
  %v1213 = vunpack.c.h.b16 %v1022
  %v1214 = vunpack.c.l.b16 %v1023
  %v1215 = vunpack.c.h.b16 %v1023
  %v1216 = vunpack.c.l.b16 %v1024
  %v1217 = vunpack.c.l.b16 %v1025
  %v1218 = vunpack.c.h.b16 %v1025
  %v1219 = vunpack.c.l.b16 %v1026
  %v1220 = vunpack.c.h.b16 %v1026
  %v1221 = vunpack.c.l.b16 %v1027
  %v1222 = vunpack.c.h.b16 %v1027
  %v1223 = vunpack.c.l.b16 %v1028
  %v1224 = vunpack.c.l.b16 %v1029
  %v1225 = vunpack.c.h.b16 %v1029
  %v1226 = vunpack.c.l.b16 %v1030
  %v1227 = vunpack.c.h.b16 %v1030
  %v1228 = vunpack.c.l.b16 %v1031
  %v1229 = vunpack.c.h.b16 %v1031
  %v1230 = vunpack.c.l.b16 %v1032
  %v1231 = vunpack.c.l.b16 %v1033
  %v1232 = vunpack.c.h.b16 %v1033
  %v1233 = vunpack.c.l.b16 %v1034
  %v1234 = vunpack.c.h.b16 %v1034
  %v1235 = vunpack.c.l.b16 %v1035
  %v1236 = vunpack.c.h.b16 %v1035
  %v1237 = vunpack.c.l.b16 %v1036
  %v1238 = vunpack.c.l.b16 %v1037
  %v1239 = vunpack.c.h.b16 %v1037
  %v1240 = vunpack.c.l.b16 %v1038
  %v1241 = vunpack.c.h.b16 %v1038
  %v1242 = vunpack.c.l.b16 %v1039
  %v1243 = vunpack.c.h.b16 %v1039
  %v1244 = vunpack.c.l.b16 %v1040
  %v1245 = vunpack.c.l.b16 %v1041
  %v1246 = vunpack.c.h.b16 %v1041
  %v1247 = vunpack.c.l.b16 %v1042
  %v1248 = vunpack.c.h.b16 %v1042
  %v1249 = vunpack.c.l.b16 %v1043
  %v1250 = vunpack.c.h.b16 %v1043
  %v1251 = vunpack.c.l.b16 %v1044
  %v1252 = vunpack.c.l.b16 %v1045
  %v1253 = vunpack.c.h.b16 %v1045
  %v1254 = vunpack.c.l.b16 %v1046
  %v1255 = vunpack.c.h.b16 %v1046
  %v1256 = vunpack.c.l.b16 %v1047
  %v1257 = vunpack.c.h.b16 %v1047
  %v1258 = vunpack.c.l.b16 %v1048
  %v1259 = vunpack.c.l.b16 %v1049
  %v1260 = vunpack.c.h.b16 %v1049
  %v1261 = vunpack.c.l.b16 %v1050
  %v1262 = vunpack.c.h.b16 %v1050
  %v1263 = vunpack.c.l.b16 %v1051
  %v1264 = vunpack.c.h.b16 %v1051
  %v1265 = vunpack.c.l.b16 %v1052
  %v1266 = vpack.c.b16 %v1161, %v1154
  %v1267 = vpack.c.b16 %v1162, %v1155
  %v1268 = vpack.c.b16 %v1163, %v1156
  %v1269 = vpack.c.b16 %v1164, %v1157
  %v1270 = vpack.c.b16 %v1165, %v1158
  %v1271 = vpack.c.b16 %v1166, %v1159
  %v1272 = vpack.c.b16 %v1167, %v1160
  %v1273 = vpack.c.b16 %v1175, %v1168
  %v1274 = vpack.c.b16 %v1176, %v1169
  %v1275 = vpack.c.b16 %v1177, %v1170
  %v1276 = vpack.c.b16 %v1178, %v1171
  %v1277 = vpack.c.b16 %v1179, %v1172
  %v1278 = vpack.c.b16 %v1180, %v1173
  %v1279 = vpack.c.b16 %v1181, %v1174
  %v1280 = vpack.c.b16 %v1189, %v1182
  %v1281 = vpack.c.b16 %v1190, %v1183
  %v1282 = vpack.c.b16 %v1191, %v1184
  %v1283 = vpack.c.b16 %v1192, %v1185
  %v1284 = vpack.c.b16 %v1193, %v1186
  %v1285 = vpack.c.b16 %v1194, %v1187
  %v1286 = vpack.c.b16 %v1195, %v1188
  %v1287 = vpack.c.b16 %v1203, %v1196
  %v1288 = vpack.c.b16 %v1204, %v1197
  %v1289 = vpack.c.b16 %v1205, %v1198
  %v1290 = vpack.c.b16 %v1206, %v1199
  %v1291 = vpack.c.b16 %v1207, %v1200
  %v1292 = vpack.c.b16 %v1208, %v1201
  %v1293 = vpack.c.b16 %v1209, %v1202
  %v1294 = vpack.c.b16 %v1217, %v1210
  %v1295 = vpack.c.b16 %v1218, %v1211
  %v1296 = vpack.c.b16 %v1219, %v1212
  %v1297 = vpack.c.b16 %v1220, %v1213
  %v1298 = vpack.c.b16 %v1221, %v1214
  %v1299 = vpack.c.b16 %v1222, %v1215
  %v1300 = vpack.c.b16 %v1223, %v1216
  %v1301 = vpack.c.b16 %v1231, %v1224
  %v1302 = vpack.c.b16 %v1232, %v1225
  %v1303 = vpack.c.b16 %v1233, %v1226
  %v1304 = vpack.c.b16 %v1234, %v1227
  %v1305 = vpack.c.b16 %v1235, %v1228
  %v1306 = vpack.c.b16 %v1236, %v1229
  %v1307 = vpack.c.b16 %v1237, %v1230
  %v1308 = vpack.c.b16 %v1245, %v1238
  %v1309 = vpack.c.b16 %v1246, %v1239
  %v1310 = vpack.c.b16 %v1247, %v1240
  %v1311 = vpack.c.b16 %v1248, %v1241
  %v1312 = vpack.c.b16 %v1249, %v1242
  %v1313 = vpack.c.b16 %v1250, %v1243
  %v1314 = vpack.c.b16 %v1251, %v1244
  %v1315 = vpack.c.b16 %v1259, %v1252
  %v1316 = vpack.c.b16 %v1260, %v1253
  %v1317 = vpack.c.b16 %v1261, %v1254
  %v1318 = vpack.c.b16 %v1262, %v1255
  %v1319 = vpack.c.b16 %v1263, %v1256
  %v1320 = vpack.c.b16 %v1264, %v1257
  %v1321 = vpack.c.b16 %v1265, %v1258
  %1378 = vmatprep.subr.bf16.mxu0 %v1316
  %1379 = vmatpush1.bf16.msra.mxu0 %v1315
  %1380 = vmatprep.subr.bf16.mxu0 %v1309
  %1381 = vmatpush1.bf16.msra.mxu0 %v1308
  %1382 = vmatprep.subr.bf16.mxu0 %v1302
  %1383 = vmatpush1.bf16.msra.mxu0 %v1301
  %1384 = vmatprep.subr.bf16.mxu0 %v1295
  %1385 = vmatpush1.bf16.msra.mxu0 %v1294
  %1386 = vmatprep.subr.bf16.mxu0 %v1288
  %1387 = vmatpush1.bf16.msra.mxu0 %v1287
  %1388 = vmatprep.subr.bf16.mxu0 %v1281
  %1389 = vmatpush1.bf16.msra.mxu0 %v1280
  %1390 = vmatprep.subr.bf16.mxu0 %v1274
  %1391 = vmatpush1.bf16.msra.mxu0 %v1273
  %1392 = vmatprep.subr.bf16.mxu0 %v1267
  %1393 = vmatpush1.bf16.msra.mxu0 %v1266
  %1394 = vmatprep.subr.bf16.mxu0 0
  %1395 = vmatpush2.bf16.msra.mxu0 0
  %1396 = vmatprep.subr.bf16.mxu0 0
  %1397 = vmatpush2.bf16.msra.mxu0 0
  %1398 = vmatprep.subr.bf16.mxu0 0
  %1399 = vmatpush2.bf16.msra.mxu0 0
  %1400 = vmatprep.subr.bf16.mxu0 0
  %1401 = vmatpush2.bf16.msra.mxu0 0
  %1402 = vmatprep.subr.bf16.mxu0 0
  %1403 = vmatpush2.bf16.msra.mxu0 0
  %1404 = vmatprep.subr.bf16.mxu0 0
  %1405 = vmatpush2.bf16.msra.mxu0 0
  %1406 = vmatprep.subr.bf16.mxu0 0
  %1407 = vmatpush2.bf16.msra.mxu0 0
  %1408 = vmatprep.subr.bf16.mxu0 0
  %1409 = vmatpush2.bf16.msra.mxu0 0
  %1410 = vmatprep.mubr.bf16.mxu0 0
  %1411 = vmatmul.mubr.bf16.gmra.mxu0 %v988
  %v1412 = vpop.f32.mrf.mxu0
  %v1413 = vadd.f32 %v1058, %v1412
  %v1414 = vpop.f32.mrf.mxu0
  %v1415 = vadd.f32 %v1062, %v1414
  %v1416 = vpop.f32.mrf.mxu0
  %v1417 = vpop.f32.mrf.mxu0
  %1418 = vdwg.mxu0
  %1419 = vmatprep.subr.bf16.mxu0 %v1318
  %1420 = vmatpush1.bf16.msra.mxu0 %v1317
  %1421 = vmatprep.subr.bf16.mxu0 %v1311
  %1422 = vmatpush1.bf16.msra.mxu0 %v1310
  %1423 = vmatprep.subr.bf16.mxu0 %v1304
  %1424 = vmatpush1.bf16.msra.mxu0 %v1303
  %1425 = vmatprep.subr.bf16.mxu0 %v1297
  %1426 = vmatpush1.bf16.msra.mxu0 %v1296
  %1427 = vmatprep.subr.bf16.mxu0 %v1290
  %1428 = vmatpush1.bf16.msra.mxu0 %v1289
  %1429 = vmatprep.subr.bf16.mxu0 %v1283
  %1430 = vmatpush1.bf16.msra.mxu0 %v1282
  %1431 = vmatprep.subr.bf16.mxu0 %v1276
  %1432 = vmatpush1.bf16.msra.mxu0 %v1275
  %1433 = vmatprep.subr.bf16.mxu0 %v1269
  %1434 = vmatpush1.bf16.msra.mxu0 %v1268
  %1435 = vmatprep.subr.bf16.mxu0 0
  %1436 = vmatpush2.bf16.msra.mxu0 0
  %1437 = vmatprep.subr.bf16.mxu0 0
  %1438 = vmatpush2.bf16.msra.mxu0 0
  %1439 = vmatprep.subr.bf16.mxu0 0
  %1440 = vmatpush2.bf16.msra.mxu0 0
  %1441 = vmatprep.subr.bf16.mxu0 0
  %1442 = vmatpush2.bf16.msra.mxu0 0
  %1443 = vmatprep.subr.bf16.mxu0 0
  %1444 = vmatpush2.bf16.msra.mxu0 0
  %1445 = vmatprep.subr.bf16.mxu0 0
  %1446 = vmatpush2.bf16.msra.mxu0 0
  %1447 = vmatprep.subr.bf16.mxu0 0
  %1448 = vmatpush2.bf16.msra.mxu0 0
  %1449 = vmatprep.subr.bf16.mxu0 0
  %1450 = vmatpush2.bf16.msra.mxu0 0
  %1451 = vmatprep.mubr.bf16.mxu0 0
  %1452 = vmatmul.mubr.bf16.gmra.mxu0 %v988
  %v1453 = vpop.f32.mrf.mxu0
  %v1454 = vadd.f32 %v1066, %v1453
  %v1455 = vpop.f32.mrf.mxu0
  %v1456 = vadd.f32 %v1070, %v1455
  %v1457 = vpop.f32.mrf.mxu0
  %v1458 = vpop.f32.mrf.mxu0
  %1459 = vdwg.mxu0
  %1460 = vmatprep.subr.bf16.mxu0 %v1320
  %1461 = vmatpush1.bf16.msra.mxu0 %v1319
  %1462 = vmatprep.subr.bf16.mxu0 %v1313
  %1463 = vmatpush1.bf16.msra.mxu0 %v1312
  %1464 = vmatprep.subr.bf16.mxu0 %v1306
  %1465 = vmatpush1.bf16.msra.mxu0 %v1305
  %1466 = vmatprep.subr.bf16.mxu0 %v1299
  %1467 = vmatpush1.bf16.msra.mxu0 %v1298
  %1468 = vmatprep.subr.bf16.mxu0 %v1292
  %1469 = vmatpush1.bf16.msra.mxu0 %v1291
  %1470 = vmatprep.subr.bf16.mxu0 %v1285
  %1471 = vmatpush1.bf16.msra.mxu0 %v1284
  %1472 = vmatprep.subr.bf16.mxu0 %v1278
  %1473 = vmatpush1.bf16.msra.mxu0 %v1277
  %1474 = vmatprep.subr.bf16.mxu0 %v1271
  %1475 = vmatpush1.bf16.msra.mxu0 %v1270
  %1476 = vmatprep.subr.bf16.mxu0 0
  %1477 = vmatpush2.bf16.msra.mxu0 0
  %1478 = vmatprep.subr.bf16.mxu0 0
  %1479 = vmatpush2.bf16.msra.mxu0 0
  %1480 = vmatprep.subr.bf16.mxu0 0
  %1481 = vmatpush2.bf16.msra.mxu0 0
  %1482 = vmatprep.subr.bf16.mxu0 0
  %1483 = vmatpush2.bf16.msra.mxu0 0
  %1484 = vmatprep.subr.bf16.mxu0 0
  %1485 = vmatpush2.bf16.msra.mxu0 0
  %1486 = vmatprep.subr.bf16.mxu0 0
  %1487 = vmatpush2.bf16.msra.mxu0 0
  %1488 = vmatprep.subr.bf16.mxu0 0
  %1489 = vmatpush2.bf16.msra.mxu0 0
  %1490 = vmatprep.subr.bf16.mxu0 0
  %1491 = vmatpush2.bf16.msra.mxu0 0
  %1492 = vmatprep.mubr.bf16.mxu0 0
  %1493 = vmatmul.mubr.bf16.gmra.mxu0 %v988
  %v1494 = vpop.f32.mrf.mxu0
  %v1495 = vadd.f32 %v1074, %v1494
  %v1496 = vpop.f32.mrf.mxu0
  %v1497 = vadd.f32 %v1078, %v1496
  %v1498 = vpop.f32.mrf.mxu0
  %v1499 = vpop.f32.mrf.mxu0
  %1500 = vdwg.mxu0
  %1501 = vmatprep.subr.bf16.mxu0 0
  %1502 = vmatpush1.bf16.msra.mxu0 %v1321
  %1503 = vmatprep.subr.bf16.mxu0 0
  %1504 = vmatpush1.bf16.msra.mxu0 %v1314
  %1505 = vmatprep.subr.bf16.mxu0 0
  %1506 = vmatpush1.bf16.msra.mxu0 %v1307
  %1507 = vmatprep.subr.bf16.mxu0 0
  %1508 = vmatpush1.bf16.msra.mxu0 %v1300
  %1509 = vmatprep.subr.bf16.mxu0 0
  %1510 = vmatpush1.bf16.msra.mxu0 %v1293
  %1511 = vmatprep.subr.bf16.mxu0 0
  %1512 = vmatpush1.bf16.msra.mxu0 %v1286
  %1513 = vmatprep.subr.bf16.mxu0 0
  %1514 = vmatpush1.bf16.msra.mxu0 %v1279
  %1515 = vmatprep.subr.bf16.mxu0 0
  %1516 = vmatpush1.bf16.msra.mxu0 %v1272
  %1517 = vmatprep.subr.bf16.mxu0 0
  %1518 = vmatpush2.bf16.msra.mxu0 0
  %1519 = vmatprep.subr.bf16.mxu0 0
  %1520 = vmatpush2.bf16.msra.mxu0 0
  %1521 = vmatprep.subr.bf16.mxu0 0
  %1522 = vmatpush2.bf16.msra.mxu0 0
  %1523 = vmatprep.subr.bf16.mxu0 0
  %1524 = vmatpush2.bf16.msra.mxu0 0
  %1525 = vmatprep.subr.bf16.mxu0 0
  %1526 = vmatpush2.bf16.msra.mxu0 0
  %1527 = vmatprep.subr.bf16.mxu0 0
  %1528 = vmatpush2.bf16.msra.mxu0 0
  %1529 = vmatprep.subr.bf16.mxu0 0
  %1530 = vmatpush2.bf16.msra.mxu0 0
  %1531 = vmatprep.subr.bf16.mxu0 0
  %1532 = vmatpush2.bf16.msra.mxu0 0
  %1533 = vmatprep.mubr.bf16.mxu0 0
  %1534 = vmatmul.mubr.bf16.gmra.mxu0 %v988
  %v1535 = vpop.f32.mrf.mxu0
  %v1536 = vadd.f32 %v1082, %v1535
  %v1537 = vpop.f32.mrf.mxu0
  %v1538 = vpop.f32.mrf.mxu0
  %v1539 = vpop.f32.mrf.mxu0
  %1540 = vdwg.mxu0
  %v1541 = vxor.u32 %v1413, 2147483648
  %v1542 = vxor.u32 %v1415, 2147483648
  %v1543 = vxor.u32 %v1454, 2147483648
  %v1544 = vxor.u32 %v1456, 2147483648
  %v1545 = vxor.u32 %v1495, 2147483648
  %v1546 = vxor.u32 %v1497, 2147483648
  %v1547 = vxor.u32 %v1536, 2147483648
  %v1548 = vmul.f32 %v1541, 1.442695
  %v1549 = vpow.pop %v1548
  %v1550 = vmul.f32 %v1542, 1.442695
  %v1551 = vpow.pop %v1550
  %v1552 = vmul.f32 %v1543, 1.442695
  %v1553 = vpow.pop %v1552
  %v1554 = vmul.f32 %v1544, 1.442695
  %v1555 = vpow.pop %v1554
  %v1556 = vmul.f32 %v1545, 1.442695
  %v1557 = vpow.pop %v1556
  %v1558 = vmul.f32 %v1546, 1.442695
  %v1559 = vpow.pop %v1558
  %v1560 = vmul.f32 %v1547, 1.442695
  %v1561 = vpow.pop %v1560
  %v1562 = vadd.f32 %v1549, 1.0
  %v1563 = vadd.f32 %v1551, 1.0
  %v1564 = vadd.f32 %v1553, 1.0
  %v1565 = vadd.f32 %v1555, 1.0
  %v1566 = vadd.f32 %v1557, 1.0
  %v1567 = vadd.f32 %v1559, 1.0
  %v1568 = vadd.f32 %v1561, 1.0
  %v1569 = vrcp.pop %v1562
  %v1570 = vmul.f32 1.0, %v1569
  %v1571 = vrcp.pop %v1563
  %v1572 = vmul.f32 1.0, %v1571
  %v1573 = vrcp.pop %v1564
  %v1574 = vmul.f32 1.0, %v1573
  %v1575 = vrcp.pop %v1565
  %v1576 = vmul.f32 1.0, %v1575
  %v1577 = vrcp.pop %v1566
  %v1578 = vmul.f32 1.0, %v1577
  %v1579 = vrcp.pop %v1567
  %v1580 = vmul.f32 1.0, %v1579
  %v1581 = vrcp.pop %v1568
  %v1582 = vmul.f32 1.0, %v1581
  %1583 = vst [vmem:[%s14] sm:$0xff] %v1570
  %1584 = vst [vmem:[%s14 + $0x8] sm:$0xff] %v1572
  %1585 = vst [vmem:[%s14 + $0x10] sm:$0xff] %v1574
  %1586 = vst [vmem:[%s14 + $0x18] sm:$0xff] %v1576
  %1587 = vst [vmem:[%s14 + $0x20] sm:$0xff] %v1578
  %1588 = vst [vmem:[%s14 + $0x28] sm:$0xff] %v1580
  %1589 = vst [vmem:[%s14 + $0x30] sm:$0xff] %v1582
  %1590 = vst.msk [vmem:[%s15] sm:$0xff] %vm859, %v759
  // Predicated region
  $region58: #{mnist_vae_forward.1} parent=0 // pred_check
    _
  $region59: #{mnist_vae_forward.1} parent=0 // pred_check_branch
    %1592 = sbr.rel (0) target = $region61
  $region60: #{mnist_vae_forward.1} parent=0 // pred_region
    _
  $region61: #{mnist_vae_forward.1} parent=0 // pred_fallthru
    _
  // Predicated region
  $region62: #{mnist_vae_forward.1} parent=0 // pred_check
    _
  $region63: #{mnist_vae_forward.1} parent=0 // pred_check_branch
    %1594 = sbr.rel (0) target = $region65
  $region64: #{mnist_vae_forward.1} parent=0 // pred_region
    _
  $region65: #{mnist_vae_forward.1} parent=0 // pred_fallthru
    _
  // Predicated region
  $region66: #{mnist_vae_forward.1} parent=0 // pred_check
    _
  $region67: #{mnist_vae_forward.1} parent=0 // pred_check_branch
    %1596 = sbr.rel (0) target = $region69
  $region68: #{mnist_vae_forward.1} parent=0 // pred_region
    _
  $region69: #{mnist_vae_forward.1} parent=0 // pred_fallthru
    _
  // Predicated region
  $region70: #{mnist_vae_forward.1} parent=0 // pred_check
    _
  $region71: #{mnist_vae_forward.1} parent=0 // pred_check_branch
    %1598 = sbr.rel (0) target = $region73
  $region72: #{mnist_vae_forward.1} parent=0 // pred_region
    _
  $region73: #{mnist_vae_forward.1} parent=0 // pred_fallthru
    _

</llo_original>
